<compile_context>
chip_gen: v6e
topology: v6e:2x2x1
jax: 0.10.0
libtpu: 0.0.40
codegen_flags: <defaults>
</compile_context>

<pallas_src>
import functools
import math

import numpy as np
import jax
import jax.numpy as jnp
from jax.experimental import pallas as pl
from jax.experimental.pallas import tpu as pltpu  # noqa: F401  (TPU backend)

# ---- small, module-consistent config ----
VOCAB = 50
MAX_SEQ = 8
PAD_IDX = 0
D_MODEL = 32
NUM_LAYERS = 2
NUM_HEADS = 4
PER_HEAD = 8          # num_heads * per_head_hidden_dim == d_model here
FFN_DIM = 64
BATCH = 2
SEQ = MAX_SEQ         # reference `embedded += pos_embed` requires seq == max_seq_length


# ---------------- Pallas kernels ----------------

def _qkv_proj_kernel(x_ref, wqkv_ref, o_ref):
    """Fused Q|K|V projection: (B*S, D) @ (D, 3*H*Dh) -> (B*S, 3*H*Dh) (no bias)."""
    x = x_ref[...].astype(jnp.bfloat16)                       # bf16 MXU operands
    y = jnp.dot(x, wqkv_ref[...], preferred_element_type=jnp.float32)
    o_ref[...] = y.astype(o_ref.dtype)


def qkv_projection(x, wqkv):
    M, K = x.shape
    N = wqkv.shape[1]
    return pl.pallas_call(
        _qkv_proj_kernel,
        out_shape=jax.ShapeDtypeStruct((M, N), jnp.bfloat16),
        grid=(1,),
        in_specs=[pl.BlockSpec((M, K), lambda i: (0, 0)),
                  pl.BlockSpec((K, N), lambda i: (0, 0))],
        out_specs=pl.BlockSpec((M, N), lambda i: (0, 0)),
    )(x, wqkv)


def _attention_kernel(q_ref, k_ref, v_ref, m_ref, o_ref, *, scale):
    """All B*H heads in one step: batched scores, masked softmax, batched P@V."""
    q = q_ref[...]                                            # (P, S, Dh) bf16
    k = k_ref[...]
    v = v_ref[...]
    # batched contraction over Dh (no explicit transpose)
    s = jnp.einsum('pqd,pkd->pqk', q, k,
                   preferred_element_type=jnp.float32) * scale
    s = jnp.where(m_ref[...] != 0, jnp.float32(-1e9), s)
    s_max = jnp.max(s, axis=-1, keepdims=True)
    e = jnp.exp(s - s_max)
    denom = jnp.sum(e, axis=-1, keepdims=True)
    p = e * pl.reciprocal(denom, approx=True)                 # EUP, frees VALU
    # TODO(synk): attention nn.Dropout(p=0.2) implemented as eval-mode identity.
    o = jnp.einsum('pqk,pkd->pqd', p.astype(jnp.bfloat16), v,
                   preferred_element_type=jnp.float32)
    o_ref[...] = o.astype(o_ref.dtype)


def multihead_attention(q, k, v, mask_rep):
    """q,k,v: (P, S, Dh) bf16 with P = batch*heads; mask_rep: (P, S, S) f32."""
    P, S, Dh = q.shape
    scale = 1.0 / math.sqrt(Dh)
    kern = functools.partial(_attention_kernel, scale=scale)
    return pl.pallas_call(
        kern,
        out_shape=jax.ShapeDtypeStruct((P, S, Dh), jnp.bfloat16),
        grid=(1,),
        in_specs=[pl.BlockSpec((P, S, Dh), lambda i: (0, 0, 0)),
                  pl.BlockSpec((P, S, Dh), lambda i: (0, 0, 0)),
                  pl.BlockSpec((P, S, Dh), lambda i: (0, 0, 0)),
                  pl.BlockSpec((P, S, S), lambda i: (0, 0, 0))],
        out_specs=pl.BlockSpec((P, S, Dh), lambda i: (0, 0, 0)),
    )(q, k, v, mask_rep)


def _proj_ln_ffn_ln_kernel(x_ref, att_ref, wo_ref, bo_ref, g1_ref, b1_ref,
                           w1_ref, fb1_ref, w2_ref, fb2_ref, g2_ref, b2_ref,
                           o_ref):
    """Fused: out-proj -> LayerNorm(x+out) -> FFN(ReLU) -> LayerNorm(residual+ffn)."""
    x = x_ref[...]                                            # (B*S, D) f32

    out = jnp.dot(att_ref[...], wo_ref[...],
                  preferred_element_type=jnp.float32) + bo_ref[...]
    z = x + out
    mean = jnp.mean(z, axis=-1, keepdims=True)
    var = jnp.mean(jnp.square(z - mean), axis=-1, keepdims=True)
    a1 = (z - mean) * jax.lax.rsqrt(var + 1e-5) * g1_ref[...] + b1_ref[...]

    # positional-wise feed-forward (dropout = eval identity)
    h = jnp.dot(a1.astype(jnp.bfloat16), w1_ref[...],
                preferred_element_type=jnp.float32) + fb1_ref[...]
    h = jnp.maximum(h, 0.0)
    h2 = jnp.dot(h.astype(jnp.bfloat16), w2_ref[...],
                 preferred_element_type=jnp.float32) + fb2_ref[...]
    z2 = a1 + h2
    mean2 = jnp.mean(z2, axis=-1, keepdims=True)
    var2 = jnp.mean(jnp.square(z2 - mean2), axis=-1, keepdims=True)
    o_ref[...] = (z2 - mean2) * jax.lax.rsqrt(var2 + 1e-5) * g2_ref[...] + b2_ref[...]


def attn_out_ffn(x, att, p):
    """x: (M, D) f32 residual; att: (M, H*Dh) bf16 attention output."""
    M, D = x.shape
    HD = att.shape[1]
    F = p["w1"].shape[1]

    def full(shape):
        return pl.BlockSpec(shape, lambda i, _s=len(shape): (0,) * _s)

    return pl.pallas_call(
        _proj_ln_ffn_ln_kernel,
        out_shape=jax.ShapeDtypeStruct((M, D), jnp.float32),
        grid=(1,),
        in_specs=[full((M, D)), full((M, HD)),
                  full((HD, D)), full((1, D)),
                  full((1, D)), full((1, D)),
                  full((D, F)), full((1, F)),
                  full((F, D)), full((1, D)),
                  full((1, D)), full((1, D))],
        out_specs=full((M, D)),
    )(x, att, p["wo"], p["bo"], p["ln1_g"], p["ln1_b"],
      p["w1"], p["b1"], p["w2"], p["b2"], p["ln2_g"], p["ln2_b"])


# ---------------- plain-JAX glue (params, embedding, pos-enc, layer wiring) ----------------

def init_params(key):
    keys = jax.random.split(key, 1 + NUM_LAYERS)
    embed_w = jax.random.normal(keys[0], (VOCAB, D_MODEL), jnp.float32)
    embed_w = embed_w.at[PAD_IDX].set(0.0)          # padding_idx row is zero

    def w(kk, shape, scale=0.05):
        return scale * jax.random.normal(kk, shape, jnp.float32)

    layers = []
    for l in range(NUM_LAYERS):
        k = jax.random.split(keys[1 + l], 8)
        wq = w(k[0], (D_MODEL, NUM_HEADS * PER_HEAD))
        wk = w(k[1], (D_MODEL, NUM_HEADS * PER_HEAD))
        wv = w(k[2], (D_MODEL, NUM_HEADS * PER_HEAD))
        layers.append(dict(
            # fused QKV weight; MXU operands stored bf16 (f32 accumulation in-kernel)
            wqkv=jnp.concatenate([wq, wk, wv], axis=1).astype(jnp.bfloat16),
            wo=w(k[3], (NUM_HEADS * PER_HEAD, D_MODEL)).astype(jnp.bfloat16),
            bo=w(k[6], (1, D_MODEL), 0.01),
            ln1_g=jnp.ones((1, D_MODEL), jnp.float32),
            ln1_b=jnp.zeros((1, D_MODEL), jnp.float32),
            w1=w(k[4], (D_MODEL, FFN_DIM)).astype(jnp.bfloat16),
            b1=w(k[7], (1, FFN_DIM), 0.01),
            w2=w(k[5], (FFN_DIM, D_MODEL)).astype(jnp.bfloat16),
            b2=jnp.zeros((1, D_MODEL), jnp.float32),
            ln2_g=jnp.ones((1, D_MODEL), jnp.float32),
            ln2_b=jnp.zeros((1, D_MODEL), jnp.float32),
        ))
    return embed_w, layers


def positional_encoding_table():
    pe = np.array([[pos / np.power(10000, 2.0 * i / D_MODEL) for i in range(D_MODEL)]
                   for pos in range(MAX_SEQ)])
    pe[:, 0::2] = np.sin(pe[:, 0::2])
    pe[:, 1::2] = np.cos(pe[:, 1::2])
    return pe  # float64, like torch.from_numpy in the reference


def position_embed(batch_size, batch_length, pe):
    """Hoisted out of the per-forward path (host-side, computed once per batch)."""
    pos = np.zeros((batch_size, MAX_SEQ, D_MODEL), dtype=np.float32)
    # exactly mirrors the reference's zip(position_encoding, batch_length) loop
    for index, (_, seq_length) in enumerate(zip(pe, batch_length)):
        pos[index, :seq_length, :] = pe[:seq_length, :]
    return jnp.asarray(pos)


def encoder_layer(x, mask_rep, p):
    B, S, D = x.shape
    H, Dh = NUM_HEADS, PER_HEAD
    xf = x.reshape(B * S, D)

    qkv = qkv_projection(xf, p["wqkv"])                      # (B*S, 3*H*Dh) bf16
    # reproduce reference `.view(batch*heads, -1, per_head)` row-major reshape
    q = qkv[:, :H * Dh].reshape(B * H, S, Dh)
    k = qkv[:, H * Dh:2 * H * Dh].reshape(B * H, S, Dh)
    v = qkv[:, 2 * H * Dh:].reshape(B * H, S, Dh)

    att = multihead_attention(q, k, v, mask_rep)             # (B*H, S, Dh) bf16
    att = att.reshape(B * S, H * Dh)                         # lane-dense (B*S, 32)

    out = attn_out_ffn(xf, att, p)                           # (B*S, D) f32
    return out.reshape(B, S, D)


def encoder_forward(x_ids, pos_emb, embed_w, layers):
    B, S = x_ids.shape
    embedded = jnp.take(embed_w, x_ids, axis=0)              # (B, S, D)
    # TODO(synk): top-level nn.Dropout(p=0.2) implemented as eval-mode identity.
    embedded = embedded + pos_emb
    pad = (x_ids == PAD_IDX)                                 # padding_mask: x.eq(0)
    mask = jnp.broadcast_to(pad[:, None, :], (B, S, S)).astype(jnp.float32)
    # reference does mask.repeat(num_heads,1,1): repeated[p] == mask[p % batch]
    mask_rep = jnp.tile(mask, (NUM_HEADS, 1, 1))             # (B*H, S, S)
    out = embedded
    for p in layers:
        out = encoder_layer(out, mask_rep, p)
    return out


if __name__ == "__main__":
    key = jax.random.PRNGKey(0)
    kp, kx = jax.random.split(key)
    embed_w, layers = init_params(kp)

    pe = positional_encoding_table()
    batch_length = [SEQ, 5]
    pos_emb = position_embed(BATCH, batch_length, pe)        # hoisted, once per batch

    x = jax.random.randint(kx, (BATCH, SEQ), 1, VOCAB, dtype=jnp.int32)
    x = x.at[1, batch_length[1]:].set(PAD_IDX)               # pad tail of second sequence

    fwd = jax.jit(encoder_forward)
    out = fwd(x, pos_emb, embed_w, layers)
    out = jax.block_until_ready(out)
    assert out.shape == (BATCH, SEQ, D_MODEL), out.shape
    assert bool(jnp.all(jnp.isfinite(out)))
    print("KERNEL_OK")
</pallas_src>

<mosaic_0001>
module attributes {stable_mosaic.version = 11 : i64} {
  func.func @_attention_kernel(%arg0: i32, %arg1: memref<8x8x8xbf16, #tpu.memory_space<vmem>>, %arg2: memref<8x8x8xbf16, #tpu.memory_space<vmem>>, %arg3: memref<8x8x8xbf16, #tpu.memory_space<vmem>>, %arg4: memref<8x8x8xf32, #tpu.memory_space<vmem>>, %arg5: memref<8x8x8xbf16, #tpu.memory_space<vmem>>) attributes {dimension_semantics = [#tpu.dimension_semantics<arbitrary>], iteration_bounds = array<i64: 1>, scalar_prefetch = 0 : i64, scratch_operands = 0 : i64, tpu.core_type = #tpu.core_type<tc>, window_params = [{pipeline_mode = #tpu.pipeline_mode<synchronous>, transform_indices = @transform_0, window_bounds = array<i64: 8, 8, 8>}, {pipeline_mode = #tpu.pipeline_mode<synchronous>, transform_indices = @transform_1, window_bounds = array<i64: 8, 8, 8>}, {pipeline_mode = #tpu.pipeline_mode<synchronous>, transform_indices = @transform_2, window_bounds = array<i64: 8, 8, 8>}, {pipeline_mode = #tpu.pipeline_mode<synchronous>, transform_indices = @transform_3, window_bounds = array<i64: 8, 8, 8>}, {pipeline_mode = #tpu.pipeline_mode<synchronous>, transform_indices = @transform_4, window_bounds = array<i64: 8, 8, 8>}]} {
    %c0 = arith.constant 0 : index
    %c0_0 = arith.constant 0 : index
    %c0_1 = arith.constant 0 : index
    %0 = vector.load %arg1[%c0, %c0_0, %c0_1] : memref<8x8x8xbf16, #tpu.memory_space<vmem>>, vector<8x8x8xbf16>
    %c0_2 = arith.constant 0 : index
    %c0_3 = arith.constant 0 : index
    %c0_4 = arith.constant 0 : index
    %1 = vector.load %arg2[%c0_2, %c0_3, %c0_4] : memref<8x8x8xbf16, #tpu.memory_space<vmem>>, vector<8x8x8xbf16>
    %c0_5 = arith.constant 0 : index
    %c0_6 = arith.constant 0 : index
    %c0_7 = arith.constant 0 : index
    %2 = vector.load %arg3[%c0_5, %c0_6, %c0_7] : memref<8x8x8xbf16, #tpu.memory_space<vmem>>, vector<8x8x8xbf16>
    "tpu.trace_start"() <{level = 10 : i32, message = "pqd,pkd->pqk"}> : () -> ()
    %cst = arith.constant dense<0.000000e+00> : vector<8x8x8xf32>
    %3 = tpu.matmul %0, %1, %cst {dimension_numbers = #tpu.dot_dimension_numbers<[2], [2], [1], [1], [0, 0, 0, 1, 1, 1], [0], [0]>} : vector<8x8x8xbf16>, vector<8x8x8xbf16>, vector<8x8x8xf32> -> vector<8x8x8xf32>
    "tpu.trace_stop"() : () -> ()
    %cst_8 = arith.constant 0.353553385 : f32
    %4 = vector.broadcast %cst_8 : f32 to vector<8x8x8xf32>
    %5 = arith.mulf %3, %4 : vector<8x8x8xf32>
    %c0_9 = arith.constant 0 : index
    %c0_10 = arith.constant 0 : index
    %c0_11 = arith.constant 0 : index
    %6 = vector.load %arg4[%c0_9, %c0_10, %c0_11] : memref<8x8x8xf32, #tpu.memory_space<vmem>>, vector<8x8x8xf32>
    %cst_12 = arith.constant 0.000000e+00 : f32
    %7 = vector.broadcast %cst_12 : f32 to vector<8x8x8xf32>
    %8 = arith.cmpf one, %6, %7 : vector<8x8x8xf32>
    %cst_13 = arith.constant -1.000000e+09 : f32
    %9 = vector.broadcast %cst_13 : f32 to vector<8x8x8xf32>
    %10 = arith.select %8, %9, %5 : vector<8x8x8xi1>, vector<8x8x8xf32>
    %cst_14 = arith.constant dense<0xFF800000> : vector<8x8xf32>
    %11 = vector.multi_reduction <maximumf>, %10, %cst_14 [2] : vector<8x8x8xf32> to vector<8x8xf32>
    %12 = vector.shape_cast %11 : vector<8x8xf32> to vector<8x8x1xf32>
    %13 = vector.broadcast %12 : vector<8x8x1xf32> to vector<8x8x8xf32>
    %14 = arith.subf %10, %13 : vector<8x8x8xf32>
    %15 = math.exp %14 : vector<8x8x8xf32>
    %cst_15 = arith.constant dense<0.000000e+00> : vector<8x8xf32>
    %16 = vector.multi_reduction <add>, %15, %cst_15 [2] : vector<8x8x8xf32> to vector<8x8xf32>
    %17 = vector.shape_cast %16 : vector<8x8xf32> to vector<8x8x1xf32>
    %18 = tpu.reciprocal %17 {approx = true} : vector<8x8x1xf32> -> vector<8x8x1xf32>
    %19 = vector.broadcast %18 : vector<8x8x1xf32> to vector<8x8x8xf32>
    %20 = arith.mulf %15, %19 : vector<8x8x8xf32>
    %21 = arith.truncf %20 : vector<8x8x8xf32> to vector<8x8x8xbf16>
    "tpu.trace_start"() <{level = 10 : i32, message = "pqk,pkd->pqd"}> : () -> ()
    %cst_16 = arith.constant dense<0.000000e+00> : vector<8x8x8xf32>
    %22 = tpu.matmul %21, %2, %cst_16 {dimension_numbers = #tpu.dot_dimension_numbers<[2], [1], [1], [2], [0, 0, 0, 1, 1, 2], [0], [0]>} : vector<8x8x8xbf16>, vector<8x8x8xbf16>, vector<8x8x8xf32> -> vector<8x8x8xf32>
    "tpu.trace_stop"() : () -> ()
    %23 = arith.truncf %22 : vector<8x8x8xf32> to vector<8x8x8xbf16>
    %c0_17 = arith.constant 0 : index
    %c0_18 = arith.constant 0 : index
    %c0_19 = arith.constant 0 : index
    %24 = vector.load %arg5[%c0_17, %c0_18, %c0_19] : memref<8x8x8xbf16, #tpu.memory_space<vmem>>, vector<8x8x8xbf16>
    tpu.vector_store %arg5[%c0_17, %c0_18, %c0_19], %23 {strides = array<i32>} : memref<8x8x8xbf16, #tpu.memory_space<vmem>>, vector<8x8x8xbf16>,
    return
  }
  func.func @transform_0(%arg0: i32) -> (i32, i32, i32) {
    %c0_i32 = arith.constant 0 : i32
    %c0_i32_0 = arith.constant 0 : i32
    %c0_i32_1 = arith.constant 0 : i32
    %c0_i32_2 = arith.constant 0 : i32
    return %c0_i32, %c0_i32_0, %c0_i32_1 : i32, i32, i32
  }
  func.func @transform_1(%arg0: i32) -> (i32, i32, i32) {
    %c0_i32 = arith.constant 0 : i32
    %c0_i32_0 = arith.constant 0 : i32
    %c0_i32_1 = arith.constant 0 : i32
    %c0_i32_2 = arith.constant 0 : i32
    return %c0_i32, %c0_i32_0, %c0_i32_1 : i32, i32, i32
  }
  func.func @transform_2(%arg0: i32) -> (i32, i32, i32) {
    %c0_i32 = arith.constant 0 : i32
    %c0_i32_0 = arith.constant 0 : i32
    %c0_i32_1 = arith.constant 0 : i32
    %c0_i32_2 = arith.constant 0 : i32
    return %c0_i32, %c0_i32_0, %c0_i32_1 : i32, i32, i32
  }
  func.func @transform_3(%arg0: i32) -> (i32, i32, i32) {
    %c0_i32 = arith.constant 0 : i32
    %c0_i32_0 = arith.constant 0 : i32
    %c0_i32_1 = arith.constant 0 : i32
    %c0_i32_2 = arith.constant 0 : i32
    return %c0_i32, %c0_i32_0, %c0_i32_1 : i32, i32, i32
  }
  func.func @transform_4(%arg0: i32) -> (i32, i32, i32) {
    %c0_i32 = arith.constant 0 : i32
    %c0_i32_0 = arith.constant 0 : i32
    %c0_i32_1 = arith.constant 0 : i32
    %c0_i32_2 = arith.constant 0 : i32
    return %c0_i32, %c0_i32_0, %c0_i32_1 : i32, i32, i32
  }
}

module attributes {stable_mosaic.version = 11 : i64} {
  func.func @_proj_ln_ffn_ln_kernel(%arg0: i32, %arg1: memref<16x32xf32, #tpu.memory_space<vmem>>, %arg2: memref<16x32xbf16, #tpu.memory_space<vmem>>, %arg3: memref<32x32xbf16, #tpu.memory_space<vmem>>, %arg4: memref<1x32xf32, #tpu.memory_space<vmem>>, %arg5: memref<1x32xf32, #tpu.memory_space<vmem>>, %arg6: memref<1x32xf32, #tpu.memory_space<vmem>>, %arg7: memref<32x64xbf16, #tpu.memory_space<vmem>>, %arg8: memref<1x64xf32, #tpu.memory_space<vmem>>, %arg9: memref<64x32xbf16, #tpu.memory_space<vmem>>, %arg10: memref<1x32xf32, #tpu.memory_space<vmem>>, %arg11: memref<1x32xf32, #tpu.memory_space<vmem>>, %arg12: memref<1x32xf32, #tpu.memory_space<vmem>>, %arg13: memref<16x32xf32, #tpu.memory_space<vmem>>) attributes {dimension_semantics = [#tpu.dimension_semantics<arbitrary>], iteration_bounds = array<i64: 1>, scalar_prefetch = 0 : i64, scratch_operands = 0 : i64, tpu.core_type = #tpu.core_type<tc>, window_params = [{pipeline_mode = #tpu.pipeline_mode<synchronous>, transform_indices = @transform_0, window_bounds = array<i64: 16, 32>}, {pipeline_mode = #tpu.pipeline_mode<synchronous>, transform_indices = @transform_1, window_bounds = array<i64: 16, 32>}, {pipeline_mode = #tpu.pipeline_mode<synchronous>, transform_indices = @transform_2, window_bounds = array<i64: 32, 32>}, {pipeline_mode = #tpu.pipeline_mode<synchronous>, transform_indices = @transform_3, window_bounds = array<i64: 1, 32>}, {pipeline_mode = #tpu.pipeline_mode<synchronous>, transform_indices = @transform_4, window_bounds = array<i64: 1, 32>}, {pipeline_mode = #tpu.pipeline_mode<synchronous>, transform_indices = @transform_5, window_bounds = array<i64: 1, 32>}, {pipeline_mode = #tpu.pipeline_mode<synchronous>, transform_indices = @transform_6, window_bounds = array<i64: 32, 64>}, {pipeline_mode = #tpu.pipeline_mode<synchronous>, transform_indices = @transform_7, window_bounds = array<i64: 1, 64>}, {pipeline_mode = #tpu.pipeline_mode<synchronous>, transform_indices = @transform_8, window_bounds = array<i64: 64, 32>}, {pipeline_mode = #tpu.pipeline_mode<synchronous>, transform_indices = @transform_9, window_bounds = array<i64: 1, 32>}, {pipeline_mode = #tpu.pipeline_mode<synchronous>, transform_indices = @transform_10, window_bounds = array<i64: 1, 32>}, {pipeline_mode = #tpu.pipeline_mode<synchronous>, transform_indices = @transform_11, window_bounds = array<i64: 1, 32>}, {pipeline_mode = #tpu.pipeline_mode<synchronous>, transform_indices = @transform_12, window_bounds = array<i64: 16, 32>}]} {
    %c0 = arith.constant 0 : index
    %c0_0 = arith.constant 0 : index
    %0 = vector.load %arg1[%c0, %c0_0] : memref<16x32xf32, #tpu.memory_space<vmem>>, vector<16x32xf32>
    %c0_1 = arith.constant 0 : index
    %c0_2 = arith.constant 0 : index
    %1 = vector.load %arg2[%c0_1, %c0_2] : memref<16x32xbf16, #tpu.memory_space<vmem>>, vector<16x32xbf16>
    %c0_3 = arith.constant 0 : index
    %c0_4 = arith.constant 0 : index
    %2 = vector.load %arg3[%c0_3, %c0_4] : memref<32x32xbf16, #tpu.memory_space<vmem>>, vector<32x32xbf16>
    %cst = arith.constant dense<0.000000e+00> : vector<16x32xf32>
    %3 = tpu.matmul %1, %2, %cst {dimension_numbers = #tpu.dot_dimension_numbers<[1], [0], [0], [1], [0, 0, 1, 1], [], []>} : vector<16x32xbf16>, vector<32x32xbf16>, vector<16x32xf32> -> vector<16x32xf32>
    %c0_5 = arith.constant 0 : index
    %c0_6 = arith.constant 0 : index
    %4 = vector.load %arg4[%c0_5, %c0_6] : memref<1x32xf32, #tpu.memory_space<vmem>>, vector<1x32xf32>
    %5 = vector.broadcast %4 : vector<1x32xf32> to vector<16x32xf32>
    %6 = arith.addf %3, %5 : vector<16x32xf32>
    %7 = arith.addf %0, %6 : vector<16x32xf32>
    %cst_7 = arith.constant dense<0.000000e+00> : vector<16xf32>
    %8 = vector.multi_reduction <add>, %7, %cst_7 [1] : vector<16x32xf32> to vector<16xf32>
    %9 = vector.shape_cast %8 : vector<16xf32> to vector<16x1xf32>
    %cst_8 = arith.constant 3.200000e+01 : f32
    %10 = vector.broadcast %cst_8 : f32 to vector<16x1xf32>
    %11 = arith.divf %9, %10 : vector<16x1xf32>
    %12 = vector.broadcast %11 : vector<16x1xf32> to vector<16x32xf32>
    %13 = arith.subf %7, %12 : vector<16x32xf32>
    %14 = arith.mulf %13, %13 : vector<16x32xf32>
    %cst_9 = arith.constant dense<0.000000e+00> : vector<16xf32>
    %15 = vector.multi_reduction <add>, %14, %cst_9 [1] : vector<16x32xf32> to vector<16xf32>
    %16 = vector.shape_cast %15 : vector<16xf32> to vector<16x1xf32>
    %cst_10 = arith.constant 3.200000e+01 : f32
    %17 = vector.broadcast %cst_10 : f32 to vector<16x1xf32>
    %18 = arith.divf %16, %17 : vector<16x1xf32>
    %19 = vector.broadcast %11 : vector<16x1xf32> to vector<16x32xf32>
    %20 = arith.subf %7, %19 : vector<16x32xf32>
    %cst_11 = arith.constant 9.99999974E-6 : f32
    %21 = vector.broadcast %cst_11 : f32 to vector<16x1xf32>
    %22 = arith.addf %18, %21 : vector<16x1xf32>
    %23 = math.rsqrt %22 : vector<16x1xf32>
    %24 = vector.broadcast %23 : vector<16x1xf32> to vector<16x32xf32>
    %25 = arith.mulf %20, %24 : vector<16x32xf32>
    %c0_12 = arith.constant 0 : index
    %c0_13 = arith.constant 0 : index
    %26 = vector.load %arg5[%c0_12, %c0_13] : memref<1x32xf32, #tpu.memory_space<vmem>>, vector<1x32xf32>
    %27 = vector.broadcast %26 : vector<1x32xf32> to vector<16x32xf32>
    %28 = arith.mulf %25, %27 : vector<16x32xf32>
    %c0_14 = arith.constant 0 : index
    %c0_15 = arith.constant 0 : index
    %29 = vector.load %arg6[%c0_14, %c0_15] : memref<1x32xf32, #tpu.memory_space<vmem>>, vector<1x32xf32>
    %30 = vector.broadcast %29 : vector<1x32xf32> to vector<16x32xf32>
    %31 = arith.addf %28, %30 : vector<16x32xf32>
    %32 = arith.truncf %31 : vector<16x32xf32> to vector<16x32xbf16>
    %c0_16 = arith.constant 0 : index
    %c0_17 = arith.constant 0 : index
    %33 = vector.load %arg7[%c0_16, %c0_17] : memref<32x64xbf16, #tpu.memory_space<vmem>>, vector<32x64xbf16>
    %cst_18 = arith.constant dense<0.000000e+00> : vector<16x64xf32>
    %34 = tpu.matmul %32, %33, %cst_18 {dimension_numbers = #tpu.dot_dimension_numbers<[1], [0], [0], [1], [0, 0, 1, 1], [], []>} : vector<16x32xbf16>, vector<32x64xbf16>, vector<16x64xf32> -> vector<16x64xf32>
    %c0_19 = arith.constant 0 : index
    %c0_20 = arith.constant 0 : index
    %35 = vector.load %arg8[%c0_19, %c0_20] : memref<1x64xf32, #tpu.memory_space<vmem>>, vector<1x64xf32>
    %36 = vector.broadcast %35 : vector<1x64xf32> to vector<16x64xf32>
    %37 = arith.addf %34, %36 : vector<16x64xf32>
    %cst_21 = arith.constant 0.000000e+00 : f32
    %38 = vector.broadcast %cst_21 : f32 to vector<16x64xf32>
    %39 = arith.maximumf %37, %38 : vector<16x64xf32>
    %40 = arith.truncf %39 : vector<16x64xf32> to vector<16x64xbf16>
    %c0_22 = arith.constant 0 : index
    %c0_23 = arith.constant 0 : index
    %41 = vector.load %arg9[%c0_22, %c0_23] : memref<64x32xbf16, #tpu.memory_space<vmem>>, vector<64x32xbf16>
    %cst_24 = arith.constant dense<0.000000e+00> : vector<16x32xf32>
    %42 = tpu.matmul %40, %41, %cst_24 {dimension_numbers = #tpu.dot_dimension_numbers<[1], [0], [0], [1], [0, 0, 1, 1], [], []>} : vector<16x64xbf16>, vector<64x32xbf16>, vector<16x32xf32> -> vector<16x32xf32>
    %c0_25 = arith.constant 0 : index
    %c0_26 = arith.constant 0 : index
    %43 = vector.load %arg10[%c0_25, %c0_26] : memref<1x32xf32, #tpu.memory_space<vmem>>, vector<1x32xf32>
    %44 = vector.broadcast %43 : vector<1x32xf32> to vector<16x32xf32>
    %45 = arith.addf %42, %44 : vector<16x32xf32>
    %46 = arith.addf %31, %45 : vector<16x32xf32>
    %cst_27 = arith.constant dense<0.000000e+00> : vector<16xf32>
    %47 = vector.multi_reduction <add>, %46, %cst_27 [1] : vector<16x32xf32> to vector<16xf32>
    %48 = vector.shape_cast %47 : vector<16xf32> to vector<16x1xf32>
    %cst_28 = arith.constant 3.200000e+01 : f32
    %49 = vector.broadcast %cst_28 : f32 to vector<16x1xf32>
    %50 = arith.divf %48, %49 : vector<16x1xf32>
    %51 = vector.broadcast %50 : vector<16x1xf32> to vector<16x32xf32>
    %52 = arith.subf %46, %51 : vector<16x32xf32>
    %53 = arith.mulf %52, %52 : vector<16x32xf32>
    %cst_29 = arith.constant dense<0.000000e+00> : vector<16xf32>
    %54 = vector.multi_reduction <add>, %53, %cst_29 [1] : vector<16x32xf32> to vector<16xf32>
    %55 = vector.shape_cast %54 : vector<16xf32> to vector<16x1xf32>
    %cst_30 = arith.constant 3.200000e+01 : f32
    %56 = vector.broadcast %cst_30 : f32 to vector<16x1xf32>
    %57 = arith.divf %55, %56 : vector<16x1xf32>
    %58 = vector.broadcast %50 : vector<16x1xf32> to vector<16x32xf32>
    %59 = arith.subf %46, %58 : vector<16x32xf32>
    %cst_31 = arith.constant 9.99999974E-6 : f32
    %60 = vector.broadcast %cst_31 : f32 to vector<16x1xf32>
    %61 = arith.addf %57, %60 : vector<16x1xf32>
    %62 = math.rsqrt %61 : vector<16x1xf32>
    %63 = vector.broadcast %62 : vector<16x1xf32> to vector<16x32xf32>
    %64 = arith.mulf %59, %63 : vector<16x32xf32>
    %c0_32 = arith.constant 0 : index
    %c0_33 = arith.constant 0 : index
    %65 = vector.load %arg11[%c0_32, %c0_33] : memref<1x32xf32, #tpu.memory_space<vmem>>, vector<1x32xf32>
    %66 = vector.broadcast %65 : vector<1x32xf32> to vector<16x32xf32>
    %67 = arith.mulf %64, %66 : vector<16x32xf32>
    %c0_34 = arith.constant 0 : index
    %c0_35 = arith.constant 0 : index
    %68 = vector.load %arg12[%c0_34, %c0_35] : memref<1x32xf32, #tpu.memory_space<vmem>>, vector<1x32xf32>
    %69 = vector.broadcast %68 : vector<1x32xf32> to vector<16x32xf32>
    %70 = arith.addf %67, %69 : vector<16x32xf32>
    %c0_36 = arith.constant 0 : index
    %c0_37 = arith.constant 0 : index
    %71 = vector.load %arg13[%c0_36, %c0_37] : memref<16x32xf32, #tpu.memory_space<vmem>>, vector<16x32xf32>
    tpu.vector_store %arg13[%c0_36, %c0_37], %70 {strides = array<i32>} : memref<16x32xf32, #tpu.memory_space<vmem>>, vector<16x32xf32>,
    return
  }
  func.func @transform_0(%arg0: i32) -> (i32, i32) {
    %c0_i32 = arith.constant 0 : i32
    %c0_i32_0 = arith.constant 0 : i32
    %c0_i32_1 = arith.constant 0 : i32
    return %c0_i32, %c0_i32_0 : i32, i32
  }
  func.func @transform_1(%arg0: i32) -> (i32, i32) {
    %c0_i32 = arith.constant 0 : i32
    %c0_i32_0 = arith.constant 0 : i32
    %c0_i32_1 = arith.constant 0 : i32
    return %c0_i32, %c0_i32_0 : i32, i32
  }
  func.func @transform_2(%arg0: i32) -> (i32, i32) {
    %c0_i32 = arith.constant 0 : i32
    %c0_i32_0 = arith.constant 0 : i32
    %c0_i32_1 = arith.constant 0 : i32
    return %c0_i32, %c0_i32_0 : i32, i32
  }
  func.func @transform_3(%arg0: i32) -> (i32, i32) {
    %c0_i32 = arith.constant 0 : i32
    %c0_i32_0 = arith.constant 0 : i32
    %c0_i32_1 = arith.constant 0 : i32
    return %c0_i32, %c0_i32_0 : i32, i32
  }
  func.func @transform_4(%arg0: i32) -> (i32, i32) {
    %c0_i32 = arith.constant 0 : i32
    %c0_i32_0 = arith.constant 0 : i32
    %c0_i32_1 = arith.constant 0 : i32
    return %c0_i32, %c0_i32_0 : i32, i32
  }
  func.func @transform_5(%arg0: i32) -> (i32, i32) {
    %c0_i32 = arith.constant 0 : i32
    %c0_i32_0 = arith.constant 0 : i32
    %c0_i32_1 = arith.constant 0 : i32
    return %c0_i32, %c0_i32_0 : i32, i32
  }
  func.func @transform_6(%arg0: i32) -> (i32, i32) {
    %c0_i32 = arith.constant 0 : i32
    %c0_i32_0 = arith.constant 0 : i32
    %c0_i32_1 = arith.constant 0 : i32
    return %c0_i32, %c0_i32_0 : i32, i32
  }
  func.func @transform_7(%arg0: i32) -> (i32, i32) {
    %c0_i32 = arith.constant 0 : i32
    %c0_i32_0 = arith.constant 0 : i32
    %c0_i32_1 = arith.constant 0 : i32
    return %c0_i32, %c0_i32_0 : i32, i32
  }
  func.func @transform_8(%arg0: i32) -> (i32, i32) {
    %c0_i32 = arith.constant 0 : i32
    %c0_i32_0 = arith.constant 0 : i32
    %c0_i32_1 = arith.constant 0 : i32
    return %c0_i32, %c0_i32_0 : i32, i32
  }
  func.func @transform_9(%arg0: i32) -> (i32, i32) {
    %c0_i32 = arith.constant 0 : i32
    %c0_i32_0 = arith.constant 0 : i32
    %c0_i32_1 = arith.constant 0 : i32
    return %c0_i32, %c0_i32_0 : i32, i32
  }
  func.func @transform_10(%arg0: i32) -> (i32, i32) {
    %c0_i32 = arith.constant 0 : i32
    %c0_i32_0 = arith.constant 0 : i32
    %c0_i32_1 = arith.constant 0 : i32
    return %c0_i32, %c0_i32_0 : i32, i32
  }
  func.func @transform_11(%arg0: i32) -> (i32, i32) {
    %c0_i32 = arith.constant 0 : i32
    %c0_i32_0 = arith.constant 0 : i32
    %c0_i32_1 = arith.constant 0 : i32
    return %c0_i32, %c0_i32_0 : i32, i32
  }
  func.func @transform_12(%arg0: i32) -> (i32, i32) {
    %c0_i32 = arith.constant 0 : i32
    %c0_i32_0 = arith.constant 0 : i32
    %c0_i32_1 = arith.constant 0 : i32
    return %c0_i32, %c0_i32_0 : i32, i32
  }
}

module attributes {stable_mosaic.version = 11 : i64} {
  func.func @_qkv_proj_kernel(%arg0: i32, %arg1: memref<16x32xf32, #tpu.memory_space<vmem>>, %arg2: memref<32x96xbf16, #tpu.memory_space<vmem>>, %arg3: memref<16x96xbf16, #tpu.memory_space<vmem>>) attributes {dimension_semantics = [#tpu.dimension_semantics<arbitrary>], iteration_bounds = array<i64: 1>, scalar_prefetch = 0 : i64, scratch_operands = 0 : i64, tpu.core_type = #tpu.core_type<tc>, window_params = [{pipeline_mode = #tpu.pipeline_mode<synchronous>, transform_indices = @transform_0, window_bounds = array<i64: 16, 32>}, {pipeline_mode = #tpu.pipeline_mode<synchronous>, transform_indices = @transform_1, window_bounds = array<i64: 32, 96>}, {pipeline_mode = #tpu.pipeline_mode<synchronous>, transform_indices = @transform_2, window_bounds = array<i64: 16, 96>}]} {
    %c0 = arith.constant 0 : index
    %c0_0 = arith.constant 0 : index
    %0 = vector.load %arg1[%c0, %c0_0] : memref<16x32xf32, #tpu.memory_space<vmem>>, vector<16x32xf32>
    %1 = arith.truncf %0 : vector<16x32xf32> to vector<16x32xbf16>
    %c0_1 = arith.constant 0 : index
    %c0_2 = arith.constant 0 : index
    %2 = vector.load %arg2[%c0_1, %c0_2] : memref<32x96xbf16, #tpu.memory_space<vmem>>, vector<32x96xbf16>
    %cst = arith.constant dense<0.000000e+00> : vector<16x96xf32>
    %3 = tpu.matmul %1, %2, %cst {dimension_numbers = #tpu.dot_dimension_numbers<[1], [0], [0], [1], [0, 0, 1, 1], [], []>} : vector<16x32xbf16>, vector<32x96xbf16>, vector<16x96xf32> -> vector<16x96xf32>
    %4 = arith.truncf %3 : vector<16x96xf32> to vector<16x96xbf16>
    %c0_3 = arith.constant 0 : index
    %c0_4 = arith.constant 0 : index
    %5 = vector.load %arg3[%c0_3, %c0_4] : memref<16x96xbf16, #tpu.memory_space<vmem>>, vector<16x96xbf16>
    tpu.vector_store %arg3[%c0_3, %c0_4], %4 {strides = array<i32>} : memref<16x96xbf16, #tpu.memory_space<vmem>>, vector<16x96xbf16>,
    return
  }
  func.func @transform_0(%arg0: i32) -> (i32, i32) {
    %c0_i32 = arith.constant 0 : i32
    %c0_i32_0 = arith.constant 0 : i32
    %c0_i32_1 = arith.constant 0 : i32
    return %c0_i32, %c0_i32_0 : i32, i32
  }
  func.func @transform_1(%arg0: i32) -> (i32, i32) {
    %c0_i32 = arith.constant 0 : i32
    %c0_i32_0 = arith.constant 0 : i32
    %c0_i32_1 = arith.constant 0 : i32
    return %c0_i32, %c0_i32_0 : i32, i32
  }
  func.func @transform_2(%arg0: i32) -> (i32, i32) {
    %c0_i32 = arith.constant 0 : i32
    %c0_i32_0 = arith.constant 0 : i32
    %c0_i32_1 = arith.constant 0 : i32
    return %c0_i32, %c0_i32_0 : i32, i32
  }
}

module attributes {stable_mosaic.version = 11 : i64} {
  func.func @_proj_ln_ffn_ln_kernel(%arg0: i32, %arg1: memref<16x32xf32, #tpu.memory_space<vmem>>, %arg2: memref<16x32xbf16, #tpu.memory_space<vmem>>, %arg3: memref<32x32xbf16, #tpu.memory_space<vmem>>, %arg4: memref<1x32xf32, #tpu.memory_space<vmem>>, %arg5: memref<1x32xf32, #tpu.memory_space<vmem>>, %arg6: memref<1x32xf32, #tpu.memory_space<vmem>>, %arg7: memref<32x64xbf16, #tpu.memory_space<vmem>>, %arg8: memref<1x64xf32, #tpu.memory_space<vmem>>, %arg9: memref<64x32xbf16, #tpu.memory_space<vmem>>, %arg10: memref<1x32xf32, #tpu.memory_space<vmem>>, %arg11: memref<1x32xf32, #tpu.memory_space<vmem>>, %arg12: memref<1x32xf32, #tpu.memory_space<vmem>>, %arg13: memref<16x32xf32, #tpu.memory_space<vmem>>) attributes {dimension_semantics = [#tpu.dimension_semantics<arbitrary>], iteration_bounds = array<i64: 1>, scalar_prefetch = 0 : i64, scratch_operands = 0 : i64, tpu.core_type = #tpu.core_type<tc>, window_params = [{pipeline_mode = #tpu.pipeline_mode<synchronous>, transform_indices = @transform_0, window_bounds = array<i64: 16, 32>}, {pipeline_mode = #tpu.pipeline_mode<synchronous>, transform_indices = @transform_1, window_bounds = array<i64: 16, 32>}, {pipeline_mode = #tpu.pipeline_mode<synchronous>, transform_indices = @transform_2, window_bounds = array<i64: 32, 32>}, {pipeline_mode = #tpu.pipeline_mode<synchronous>, transform_indices = @transform_3, window_bounds = array<i64: 1, 32>}, {pipeline_mode = #tpu.pipeline_mode<synchronous>, transform_indices = @transform_4, window_bounds = array<i64: 1, 32>}, {pipeline_mode = #tpu.pipeline_mode<synchronous>, transform_indices = @transform_5, window_bounds = array<i64: 1, 32>}, {pipeline_mode = #tpu.pipeline_mode<synchronous>, transform_indices = @transform_6, window_bounds = array<i64: 32, 64>}, {pipeline_mode = #tpu.pipeline_mode<synchronous>, transform_indices = @transform_7, window_bounds = array<i64: 1, 64>}, {pipeline_mode = #tpu.pipeline_mode<synchronous>, transform_indices = @transform_8, window_bounds = array<i64: 64, 32>}, {pipeline_mode = #tpu.pipeline_mode<synchronous>, transform_indices = @transform_9, window_bounds = array<i64: 1, 32>}, {pipeline_mode = #tpu.pipeline_mode<synchronous>, transform_indices = @transform_10, window_bounds = array<i64: 1, 32>}, {pipeline_mode = #tpu.pipeline_mode<synchronous>, transform_indices = @transform_11, window_bounds = array<i64: 1, 32>}, {pipeline_mode = #tpu.pipeline_mode<synchronous>, transform_indices = @transform_12, window_bounds = array<i64: 16, 32>}]} {
    %c0 = arith.constant 0 : index
    %c0_0 = arith.constant 0 : index
    %0 = vector.load %arg1[%c0, %c0_0] : memref<16x32xf32, #tpu.memory_space<vmem>>, vector<16x32xf32>
    %c0_1 = arith.constant 0 : index
    %c0_2 = arith.constant 0 : index
    %1 = vector.load %arg2[%c0_1, %c0_2] : memref<16x32xbf16, #tpu.memory_space<vmem>>, vector<16x32xbf16>
    %c0_3 = arith.constant 0 : index
    %c0_4 = arith.constant 0 : index
    %2 = vector.load %arg3[%c0_3, %c0_4] : memref<32x32xbf16, #tpu.memory_space<vmem>>, vector<32x32xbf16>
    %cst = arith.constant dense<0.000000e+00> : vector<16x32xf32>
    %3 = tpu.matmul %1, %2, %cst {dimension_numbers = #tpu.dot_dimension_numbers<[1], [0], [0], [1], [0, 0, 1, 1], [], []>} : vector<16x32xbf16>, vector<32x32xbf16>, vector<16x32xf32> -> vector<16x32xf32>
    %c0_5 = arith.constant 0 : index
    %c0_6 = arith.constant 0 : index
    %4 = vector.load %arg4[%c0_5, %c0_6] : memref<1x32xf32, #tpu.memory_space<vmem>>, vector<1x32xf32>
    %5 = vector.broadcast %4 : vector<1x32xf32> to vector<16x32xf32>
    %6 = arith.addf %3, %5 : vector<16x32xf32>
    %7 = arith.addf %0, %6 : vector<16x32xf32>
    %cst_7 = arith.constant dense<0.000000e+00> : vector<16xf32>
    %8 = vector.multi_reduction <add>, %7, %cst_7 [1] : vector<16x32xf32> to vector<16xf32>
    %9 = vector.shape_cast %8 : vector<16xf32> to vector<16x1xf32>
    %cst_8 = arith.constant 3.200000e+01 : f32
    %10 = vector.broadcast %cst_8 : f32 to vector<16x1xf32>
    %11 = arith.divf %9, %10 : vector<16x1xf32>
    %12 = vector.broadcast %11 : vector<16x1xf32> to vector<16x32xf32>
    %13 = arith.subf %7, %12 : vector<16x32xf32>
    %14 = arith.mulf %13, %13 : vector<16x32xf32>
    %cst_9 = arith.constant dense<0.000000e+00> : vector<16xf32>
    %15 = vector.multi_reduction <add>, %14, %cst_9 [1] : vector<16x32xf32> to vector<16xf32>
    %16 = vector.shape_cast %15 : vector<16xf32> to vector<16x1xf32>
    %cst_10 = arith.constant 3.200000e+01 : f32
    %17 = vector.broadcast %cst_10 : f32 to vector<16x1xf32>
    %18 = arith.divf %16, %17 : vector<16x1xf32>
    %19 = vector.broadcast %11 : vector<16x1xf32> to vector<16x32xf32>
    %20 = arith.subf %7, %19 : vector<16x32xf32>
    %cst_11 = arith.constant 9.99999974E-6 : f32
    %21 = vector.broadcast %cst_11 : f32 to vector<16x1xf32>
    %22 = arith.addf %18, %21 : vector<16x1xf32>
    %23 = math.rsqrt %22 : vector<16x1xf32>
    %24 = vector.broadcast %23 : vector<16x1xf32> to vector<16x32xf32>
    %25 = arith.mulf %20, %24 : vector<16x32xf32>
    %c0_12 = arith.constant 0 : index
    %c0_13 = arith.constant 0 : index
    %26 = vector.load %arg5[%c0_12, %c0_13] : memref<1x32xf32, #tpu.memory_space<vmem>>, vector<1x32xf32>
    %27 = vector.broadcast %26 : vector<1x32xf32> to vector<16x32xf32>
    %28 = arith.mulf %25, %27 : vector<16x32xf32>
    %c0_14 = arith.constant 0 : index
    %c0_15 = arith.constant 0 : index
    %29 = vector.load %arg6[%c0_14, %c0_15] : memref<1x32xf32, #tpu.memory_space<vmem>>, vector<1x32xf32>
    %30 = vector.broadcast %29 : vector<1x32xf32> to vector<16x32xf32>
    %31 = arith.addf %28, %30 : vector<16x32xf32>
    %32 = arith.truncf %31 : vector<16x32xf32> to vector<16x32xbf16>
    %c0_16 = arith.constant 0 : index
    %c0_17 = arith.constant 0 : index
    %33 = vector.load %arg7[%c0_16, %c0_17] : memref<32x64xbf16, #tpu.memory_space<vmem>>, vector<32x64xbf16>
    %cst_18 = arith.constant dense<0.000000e+00> : vector<16x64xf32>
    %34 = tpu.matmul %32, %33, %cst_18 {dimension_numbers = #tpu.dot_dimension_numbers<[1], [0], [0], [1], [0, 0, 1, 1], [], []>} : vector<16x32xbf16>, vector<32x64xbf16>, vector<16x64xf32> -> vector<16x64xf32>
    %c0_19 = arith.constant 0 : index
    %c0_20 = arith.constant 0 : index
    %35 = vector.load %arg8[%c0_19, %c0_20] : memref<1x64xf32, #tpu.memory_space<vmem>>, vector<1x64xf32>
    %36 = vector.broadcast %35 : vector<1x64xf32> to vector<16x64xf32>
    %37 = arith.addf %34, %36 : vector<16x64xf32>
    %cst_21 = arith.constant 0.000000e+00 : f32
    %38 = vector.broadcast %cst_21 : f32 to vector<16x64xf32>
    %39 = arith.maximumf %37, %38 : vector<16x64xf32>
    %40 = arith.truncf %39 : vector<16x64xf32> to vector<16x64xbf16>
    %c0_22 = arith.constant 0 : index
    %c0_23 = arith.constant 0 : index
    %41 = vector.load %arg9[%c0_22, %c0_23] : memref<64x32xbf16, #tpu.memory_space<vmem>>, vector<64x32xbf16>
    %cst_24 = arith.constant dense<0.000000e+00> : vector<16x32xf32>
    %42 = tpu.matmul %40, %41, %cst_24 {dimension_numbers = #tpu.dot_dimension_numbers<[1], [0], [0], [1], [0, 0, 1, 1], [], []>} : vector<16x64xbf16>, vector<64x32xbf16>, vector<16x32xf32> -> vector<16x32xf32>
    %c0_25 = arith.constant 0 : index
    %c0_26 = arith.constant 0 : index
    %43 = vector.load %arg10[%c0_25, %c0_26] : memref<1x32xf32, #tpu.memory_space<vmem>>, vector<1x32xf32>
    %44 = vector.broadcast %43 : vector<1x32xf32> to vector<16x32xf32>
    %45 = arith.addf %42, %44 : vector<16x32xf32>
    %46 = arith.addf %31, %45 : vector<16x32xf32>
    %cst_27 = arith.constant dense<0.000000e+00> : vector<16xf32>
    %47 = vector.multi_reduction <add>, %46, %cst_27 [1] : vector<16x32xf32> to vector<16xf32>
    %48 = vector.shape_cast %47 : vector<16xf32> to vector<16x1xf32>
    %cst_28 = arith.constant 3.200000e+01 : f32
    %49 = vector.broadcast %cst_28 : f32 to vector<16x1xf32>
    %50 = arith.divf %48, %49 : vector<16x1xf32>
    %51 = vector.broadcast %50 : vector<16x1xf32> to vector<16x32xf32>
    %52 = arith.subf %46, %51 : vector<16x32xf32>
    %53 = arith.mulf %52, %52 : vector<16x32xf32>
    %cst_29 = arith.constant dense<0.000000e+00> : vector<16xf32>
    %54 = vector.multi_reduction <add>, %53, %cst_29 [1] : vector<16x32xf32> to vector<16xf32>
    %55 = vector.shape_cast %54 : vector<16xf32> to vector<16x1xf32>
    %cst_30 = arith.constant 3.200000e+01 : f32
    %56 = vector.broadcast %cst_30 : f32 to vector<16x1xf32>
    %57 = arith.divf %55, %56 : vector<16x1xf32>
    %58 = vector.broadcast %50 : vector<16x1xf32> to vector<16x32xf32>
    %59 = arith.subf %46, %58 : vector<16x32xf32>
    %cst_31 = arith.constant 9.99999974E-6 : f32
    %60 = vector.broadcast %cst_31 : f32 to vector<16x1xf32>
    %61 = arith.addf %57, %60 : vector<16x1xf32>
    %62 = math.rsqrt %61 : vector<16x1xf32>
    %63 = vector.broadcast %62 : vector<16x1xf32> to vector<16x32xf32>
    %64 = arith.mulf %59, %63 : vector<16x32xf32>
    %c0_32 = arith.constant 0 : index
    %c0_33 = arith.constant 0 : index
    %65 = vector.load %arg11[%c0_32, %c0_33] : memref<1x32xf32, #tpu.memory_space<vmem>>, vector<1x32xf32>
    %66 = vector.broadcast %65 : vector<1x32xf32> to vector<16x32xf32>
    %67 = arith.mulf %64, %66 : vector<16x32xf32>
    %c0_34 = arith.constant 0 : index
    %c0_35 = arith.constant 0 : index
    %68 = vector.load %arg12[%c0_34, %c0_35] : memref<1x32xf32, #tpu.memory_space<vmem>>, vector<1x32xf32>
    %69 = vector.broadcast %68 : vector<1x32xf32> to vector<16x32xf32>
    %70 = arith.addf %67, %69 : vector<16x32xf32>
    %c0_36 = arith.constant 0 : index
    %c0_37 = arith.constant 0 : index
    %71 = vector.load %arg13[%c0_36, %c0_37] : memref<16x32xf32, #tpu.memory_space<vmem>>, vector<16x32xf32>
    tpu.vector_store %arg13[%c0_36, %c0_37], %70 {strides = array<i32>} : memref<16x32xf32, #tpu.memory_space<vmem>>, vector<16x32xf32>,
    return
  }
  func.func @transform_0(%arg0: i32) -> (i32, i32) {
    %c0_i32 = arith.constant 0 : i32
    %c0_i32_0 = arith.constant 0 : i32
    %c0_i32_1 = arith.constant 0 : i32
    return %c0_i32, %c0_i32_0 : i32, i32
  }
  func.func @transform_1(%arg0: i32) -> (i32, i32) {
    %c0_i32 = arith.constant 0 : i32
    %c0_i32_0 = arith.constant 0 : i32
    %c0_i32_1 = arith.constant 0 : i32
    return %c0_i32, %c0_i32_0 : i32, i32
  }
  func.func @transform_2(%arg0: i32) -> (i32, i32) {
    %c0_i32 = arith.constant 0 : i32
    %c0_i32_0 = arith.constant 0 : i32
    %c0_i32_1 = arith.constant 0 : i32
    return %c0_i32, %c0_i32_0 : i32, i32
  }
  func.func @transform_3(%arg0: i32) -> (i32, i32) {
    %c0_i32 = arith.constant 0 : i32
    %c0_i32_0 = arith.constant 0 : i32
    %c0_i32_1 = arith.constant 0 : i32
    return %c0_i32, %c0_i32_0 : i32, i32
  }
  func.func @transform_4(%arg0: i32) -> (i32, i32) {
    %c0_i32 = arith.constant 0 : i32
    %c0_i32_0 = arith.constant 0 : i32
    %c0_i32_1 = arith.constant 0 : i32
    return %c0_i32, %c0_i32_0 : i32, i32
  }
  func.func @transform_5(%arg0: i32) -> (i32, i32) {
    %c0_i32 = arith.constant 0 : i32
    %c0_i32_0 = arith.constant 0 : i32
    %c0_i32_1 = arith.constant 0 : i32
    return %c0_i32, %c0_i32_0 : i32, i32
  }
  func.func @transform_6(%arg0: i32) -> (i32, i32) {
    %c0_i32 = arith.constant 0 : i32
    %c0_i32_0 = arith.constant 0 : i32
    %c0_i32_1 = arith.constant 0 : i32
    return %c0_i32, %c0_i32_0 : i32, i32
  }
  func.func @transform_7(%arg0: i32) -> (i32, i32) {
    %c0_i32 = arith.constant 0 : i32
    %c0_i32_0 = arith.constant 0 : i32
    %c0_i32_1 = arith.constant 0 : i32
    return %c0_i32, %c0_i32_0 : i32, i32
  }
  func.func @transform_8(%arg0: i32) -> (i32, i32) {
    %c0_i32 = arith.constant 0 : i32
    %c0_i32_0 = arith.constant 0 : i32
    %c0_i32_1 = arith.constant 0 : i32
    return %c0_i32, %c0_i32_0 : i32, i32
  }
  func.func @transform_9(%arg0: i32) -> (i32, i32) {
    %c0_i32 = arith.constant 0 : i32
    %c0_i32_0 = arith.constant 0 : i32
    %c0_i32_1 = arith.constant 0 : i32
    return %c0_i32, %c0_i32_0 : i32, i32
  }
  func.func @transform_10(%arg0: i32) -> (i32, i32) {
    %c0_i32 = arith.constant 0 : i32
    %c0_i32_0 = arith.constant 0 : i32
    %c0_i32_1 = arith.constant 0 : i32
    return %c0_i32, %c0_i32_0 : i32, i32
  }
  func.func @transform_11(%arg0: i32) -> (i32, i32) {
    %c0_i32 = arith.constant 0 : i32
    %c0_i32_0 = arith.constant 0 : i32
    %c0_i32_1 = arith.constant 0 : i32
    return %c0_i32, %c0_i32_0 : i32, i32
  }
  func.func @transform_12(%arg0: i32) -> (i32, i32) {
    %c0_i32 = arith.constant 0 : i32
    %c0_i32_0 = arith.constant 0 : i32
    %c0_i32_1 = arith.constant 0 : i32
    return %c0_i32, %c0_i32_0 : i32, i32
  }
}

</mosaic_0001>

<llo_original>
// kernel: encoder_forward.8
$region0: #{encoder_forward.8}
  #allocation0 [shape = 'u32[]', space=smem, size = 0x4, offset = 0x4, fixed_abs, tag = 'smem constant byte address 0x4 - core index']
  #allocation1 [shape = 'u32[144,128]{1,0:T(1,128)}', space=vmem, size = 0x12000, scoped, tag = 'internal scratch']
  %s0 = inlined_call_operand.vmem [shape: f32[16,32], index: 0, kind: input, shape index: {}]
  %s1 = inlined_call_operand.vmem [shape: bf16[16,32], index: 1, kind: input, shape index: {}]
  %s2 = inlined_call_operand.vmem [shape: bf16[32,32], index: 2, kind: input, shape index: {}]
  %s3 = inlined_call_operand.vmem [shape: f32[1,32], index: 3, kind: input, shape index: {}]
  %s4 = inlined_call_operand.vmem [shape: f32[1,32], index: 4, kind: input, shape index: {}]
  %s5 = inlined_call_operand.vmem [shape: f32[1,32], index: 5, kind: input, shape index: {}]
  %s6 = inlined_call_operand.vmem [shape: bf16[32,64], index: 6, kind: input, shape index: {}]
  %s7 = inlined_call_operand.vmem [shape: f32[1,64], index: 7, kind: input, shape index: {}]
  %s8 = inlined_call_operand.vmem [shape: bf16[64,32], index: 8, kind: input, shape index: {}]
  %s9 = inlined_call_operand.vmem [shape: f32[1,32], index: 9, kind: input, shape index: {}]
  %s10 = inlined_call_operand.vmem [shape: f32[1,32], index: 10, kind: input, shape index: {}]
  %s11 = inlined_call_operand.vmem [shape: f32[1,32], index: 11, kind: input, shape index: {}]
  %s12 = inlined_call_operand.vmem [shape: f32[16,32], index: 12, kind: output, shape index: {}]
  %s13 = sld [smem:[#allocation0]]
  $region58: #{encoder_forward.8} parent=0
    _
  %s15 = ssub.s32 1, %s13
  %s16 = scalar_select 0, %s15, %s13
  // Predicated region
  $region2: #{encoder_forward.8} parent=0 // pred_check
    _
  $region3: #{encoder_forward.8} parent=0 // pred_check_branch
    %18 = sbr.rel (0) target = $region5
  $region4: #{encoder_forward.8} parent=0 // pred_region
    _
  $region5: #{encoder_forward.8} parent=0 // pred_fallthru
    _
  // Predicated region
  $region6: #{encoder_forward.8} parent=0 // pred_check
    _
  $region7: #{encoder_forward.8} parent=0 // pred_check_branch
    %20 = sbr.rel (0) target = $region9
  $region8: #{encoder_forward.8} parent=0 // pred_region
    _
  $region9: #{encoder_forward.8} parent=0 // pred_fallthru
    _
  // Predicated region
  $region10: #{encoder_forward.8} parent=0 // pred_check
    _
  $region11: #{encoder_forward.8} parent=0 // pred_check_branch
    %22 = sbr.rel (0) target = $region13
  $region12: #{encoder_forward.8} parent=0 // pred_region
    _
  $region13: #{encoder_forward.8} parent=0 // pred_fallthru
    _
  // Predicated region
  $region14: #{encoder_forward.8} parent=0 // pred_check
    _
  $region15: #{encoder_forward.8} parent=0 // pred_check_branch
    %24 = sbr.rel (0) target = $region17
  $region16: #{encoder_forward.8} parent=0 // pred_region
    _
  $region17: #{encoder_forward.8} parent=0 // pred_fallthru
    _
  // Predicated region
  $region18: #{encoder_forward.8} parent=0 // pred_check
    _
  $region19: #{encoder_forward.8} parent=0 // pred_check_branch
    %26 = sbr.rel (0) target = $region21
  $region20: #{encoder_forward.8} parent=0 // pred_region
    _
  $region21: #{encoder_forward.8} parent=0 // pred_fallthru
    _
  // Predicated region
  $region22: #{encoder_forward.8} parent=0 // pred_check
    _
  $region23: #{encoder_forward.8} parent=0 // pred_check_branch
    %28 = sbr.rel (0) target = $region25
  $region24: #{encoder_forward.8} parent=0 // pred_region
    _
  $region25: #{encoder_forward.8} parent=0 // pred_fallthru
    _
  // Predicated region
  $region26: #{encoder_forward.8} parent=0 // pred_check
    _
  $region27: #{encoder_forward.8} parent=0 // pred_check_branch
    %30 = sbr.rel (0) target = $region29
  $region28: #{encoder_forward.8} parent=0 // pred_region
    _
  $region29: #{encoder_forward.8} parent=0 // pred_fallthru
    _
  // Predicated region
  $region30: #{encoder_forward.8} parent=0 // pred_check
    _
  $region31: #{encoder_forward.8} parent=0 // pred_check_branch
    %32 = sbr.rel (0) target = $region33
  $region32: #{encoder_forward.8} parent=0 // pred_region
    _
  $region33: #{encoder_forward.8} parent=0 // pred_fallthru
    _
  // Predicated region
  $region34: #{encoder_forward.8} parent=0 // pred_check
    _
  $region35: #{encoder_forward.8} parent=0 // pred_check_branch
    %34 = sbr.rel (0) target = $region37
  $region36: #{encoder_forward.8} parent=0 // pred_region
    _
  $region37: #{encoder_forward.8} parent=0 // pred_fallthru
    _
  // Predicated region
  $region38: #{encoder_forward.8} parent=0 // pred_check
    _
  $region39: #{encoder_forward.8} parent=0 // pred_check_branch
    %36 = sbr.rel (0) target = $region41
  $region40: #{encoder_forward.8} parent=0 // pred_region
    _
  $region41: #{encoder_forward.8} parent=0 // pred_fallthru
    _
  // Predicated region
  $region42: #{encoder_forward.8} parent=0 // pred_check
    _
  $region43: #{encoder_forward.8} parent=0 // pred_check_branch
    %38 = sbr.rel (0) target = $region45
  $region44: #{encoder_forward.8} parent=0 // pred_region
    _
  $region45: #{encoder_forward.8} parent=0 // pred_fallthru
    _
  // Predicated region
  $region46: #{encoder_forward.8} parent=0 // pred_check
    _
  $region47: #{encoder_forward.8} parent=0 // pred_check_branch
    %40 = sbr.rel (0) target = $region49
  $region48: #{encoder_forward.8} parent=0 // pred_region
    _
  $region49: #{encoder_forward.8} parent=0 // pred_fallthru
    _
  %v42 = vld [vmem:[%s0] sm:$0xff]
  %v43 = vld [vmem:[%s0 + $0x8] sm:$0xff]
  %v44 = vld [vmem:[%s1] sm:$0xf]
  %v45 = vld [vmem:[%s1 + $0x4] sm:$0xf]
  %v46 = vld [vmem:[%s2] sm:$0xf]
  %v47 = vld [vmem:[%s2 + $0x4] sm:$0xf]
  %v48 = vld [vmem:[%s2 + $0x8] sm:$0xf]
  %v49 = vld [vmem:[%s2 + $0xc] sm:$0xf]
  %v50 = vld [vmem:[%s3] sm:$0x1]
  %v52 = vlaneseq
  %v53 = vshrl.u32 %v52, 7
  %v54 = vsub.s32 0, %v53
  %v55 = vrot.slane %v50, %v54
  %v59 = vunpack.c.l.b16 %v44
  %v60 = vunpack.c.l.b16 %v45
  %v61 = vpack.c.b16 %v60, %v59
  %v66 = vunpack.c.l.b16 %v46
  %v67 = vunpack.c.l.b16 %v47
  %v68 = vunpack.c.l.b16 %v48
  %v69 = vunpack.c.l.b16 %v49
  %v70 = vpack.c.b16 %v67, %v66
  %v71 = vpack.c.b16 %v69, %v68
  %vm74 = vcmask 261120
  %v76 = vsel %vm74, %v61, 0
  %78 = vmatprep.subr.bf16.mxu0 0
  %79 = vmatpush1.bf16.msra.mxu0 0
  %80 = vmatprep.subr.bf16.mxu0 0
  %81 = vmatpush1.bf16.msra.mxu0 0
  %82 = vmatprep.subr.bf16.mxu0 0
  %83 = vmatpush1.bf16.msra.mxu0 0
  %84 = vmatprep.subr.bf16.mxu0 0
  %85 = vmatpush1.bf16.msra.mxu0 0
  %86 = vmatprep.subr.bf16.mxu0 0
  %87 = vmatpush1.bf16.msra.mxu0 0
  %88 = vmatprep.subr.bf16.mxu0 0
  %89 = vmatpush1.bf16.msra.mxu0 0
  %90 = vmatprep.subr.bf16.mxu0 0
  %91 = vmatpush1.bf16.msra.mxu0 %v71
  %92 = vmatprep.subr.bf16.mxu0 0
  %93 = vmatpush1.bf16.msra.mxu0 %v70
  %94 = vmatprep.subr.bf16.mxu0 0
  %95 = vmatpush2.bf16.msra.mxu0 0
  %96 = vmatprep.subr.bf16.mxu0 0
  %97 = vmatpush2.bf16.msra.mxu0 0
  %98 = vmatprep.subr.bf16.mxu0 0
  %99 = vmatpush2.bf16.msra.mxu0 0
  %100 = vmatprep.subr.bf16.mxu0 0
  %101 = vmatpush2.bf16.msra.mxu0 0
  %102 = vmatprep.subr.bf16.mxu0 0
  %103 = vmatpush2.bf16.msra.mxu0 0
  %104 = vmatprep.subr.bf16.mxu0 0
  %105 = vmatpush2.bf16.msra.mxu0 0
  %106 = vmatprep.subr.bf16.mxu0 0
  %107 = vmatpush2.bf16.msra.mxu0 0
  %108 = vmatprep.subr.bf16.mxu0 0
  %109 = vmatpush2.bf16.msra.mxu0 0
  %110 = vmatprep.mubr.bf16.mxu0 0
  %111 = vmatmul.mubr.bf16.gmra.mxu0 %v76
  %v112 = vpop.f32.mrf.mxu0
  %v113 = vadd.f32 %v55, %v112
  %v114 = vpop.f32.mrf.mxu0
  %v115 = vpop.f32.mrf.mxu0
  %v116 = vadd.f32 %v55, %v115
  %v117 = vpop.f32.mrf.mxu0
  %118 = vdwg.mxu0
  %v119 = vadd.f32 %v42, %v113
  %v120 = vadd.f32 %v43, %v116
  %v121 = vsel %vm74, %v119, 0.0
  %122 = vadd.xlane.f32.xlu0 %v121
  %v123 = vpop.xlane.xlu0 %122
  %v124 = vsel %vm74, %v120, 0.0
  %125 = vadd.xlane.f32.xlu0 %v124
  %v126 = vpop.xlane.xlu0 %125
  %v127 = vrcp.pop 32.0
  %v128 = vmul.f32 %v123, %v127
  %v129 = vmul.f32 %v126, %v127
  %v130 = vsub.f32 %v119, %v128
  %v131 = vsub.f32 %v120, %v129
  %v132 = vmul.f32 %v130, %v130
  %v133 = vmul.f32 %v131, %v131
  %v134 = vsel %vm74, %v132, 0.0
  %135 = vadd.xlane.f32.xlu0 %v134
  %v136 = vpop.xlane.xlu0 %135
  %v137 = vsel %vm74, %v133, 0.0
  %138 = vadd.xlane.f32.xlu0 %v137
  %v139 = vpop.xlane.xlu0 %138
  %v140 = vmul.f32 %v136, %v127
  %v141 = vmul.f32 %v139, %v127
  %v142 = vadd.f32 %v140, 1e-05
  %v143 = vadd.f32 %v141, 1e-05
  %v144 = vrsqrt.pop %v142
  %v145 = vrsqrt.pop %v143
  %v146 = vmul.f32 %v130, %v144
  %v147 = vmul.f32 %v131, %v145
  %v148 = vld [vmem:[%s4] sm:$0x1]
  %v150 = vlaneseq
  %v151 = vshrl.u32 %v150, 7
  %v152 = vsub.s32 0, %v151
  %v153 = vrot.slane %v148, %v152
  %v155 = vmul.f32 %v146, %v153
  %v156 = vmul.f32 %v147, %v153
  %v157 = vld [vmem:[%s5] sm:$0x1]
  %v159 = vlaneseq
  %v160 = vshrl.u32 %v159, 7
  %v161 = vsub.s32 0, %v160
  %v162 = vrot.slane %v157, %v161
  %v164 = vadd.f32 %v155, %v162
  %v165 = vadd.f32 %v156, %v162
  %v166 = vpack.c.bf16 %v165, %v164
  %v167 = vld [vmem:[%s6] sm:$0xf]
  %v168 = vld [vmem:[%s6 + $0x4] sm:$0xf]
  %v169 = vld [vmem:[%s6 + $0x8] sm:$0xf]
  %v170 = vld [vmem:[%s6 + $0xc] sm:$0xf]
  %v171 = vld [vmem:[%s7] sm:$0x1]
  %v173 = vlaneseq
  %v174 = vshrl.u32 %v173, 7
  %v175 = vsub.s32 0, %v174
  %v176 = vrot.slane %v171, %v175
  %v182 = vunpack.c.l.b16 %v167
  %v183 = vunpack.c.l.b16 %v168
  %v184 = vunpack.c.l.b16 %v169
  %v185 = vunpack.c.l.b16 %v170
  %v186 = vpack.c.b16 %v183, %v182
  %v187 = vpack.c.b16 %v185, %v184
  %v191 = vsel %vm74, %v166, 0
  %193 = vmatprep.subr.bf16.mxu0 0
  %194 = vmatpush1.bf16.msra.mxu0 0
  %195 = vmatprep.subr.bf16.mxu0 0
  %196 = vmatpush1.bf16.msra.mxu0 0
  %197 = vmatprep.subr.bf16.mxu0 0
  %198 = vmatpush1.bf16.msra.mxu0 0
  %199 = vmatprep.subr.bf16.mxu0 0
  %200 = vmatpush1.bf16.msra.mxu0 0
  %201 = vmatprep.subr.bf16.mxu0 0
  %202 = vmatpush1.bf16.msra.mxu0 0
  %203 = vmatprep.subr.bf16.mxu0 0
  %204 = vmatpush1.bf16.msra.mxu0 0
  %205 = vmatprep.subr.bf16.mxu0 0
  %206 = vmatpush1.bf16.msra.mxu0 %v187
  %207 = vmatprep.subr.bf16.mxu0 0
  %208 = vmatpush1.bf16.msra.mxu0 %v186
  %209 = vmatprep.subr.bf16.mxu0 0
  %210 = vmatpush2.bf16.msra.mxu0 0
  %211 = vmatprep.subr.bf16.mxu0 0
  %212 = vmatpush2.bf16.msra.mxu0 0
  %213 = vmatprep.subr.bf16.mxu0 0
  %214 = vmatpush2.bf16.msra.mxu0 0
  %215 = vmatprep.subr.bf16.mxu0 0
  %216 = vmatpush2.bf16.msra.mxu0 0
  %217 = vmatprep.subr.bf16.mxu0 0
  %218 = vmatpush2.bf16.msra.mxu0 0
  %219 = vmatprep.subr.bf16.mxu0 0
  %220 = vmatpush2.bf16.msra.mxu0 0
  %221 = vmatprep.subr.bf16.mxu0 0
  %222 = vmatpush2.bf16.msra.mxu0 0
  %223 = vmatprep.subr.bf16.mxu0 0
  %224 = vmatpush2.bf16.msra.mxu0 0
  %225 = vmatprep.mubr.bf16.mxu0 0
  %226 = vmatmul.mubr.bf16.gmra.mxu0 %v191
  %v227 = vpop.f32.mrf.mxu0
  %v228 = vadd.f32 %v176, %v227
  %v229 = vpop.f32.mrf.mxu0
  %v230 = vpop.f32.mrf.mxu0
  %v231 = vadd.f32 %v176, %v230
  %v232 = vpop.f32.mrf.mxu0
  %233 = vdwg.mxu0
  %v234 = vmax.f32 %v228, 0.0
  %v235 = vmax.f32 %v231, 0.0
  %v236 = vpack.c.bf16 %v235, %v234
  %v237 = vld [vmem:[%s8] sm:$0xf]
  %v238 = vld [vmem:[%s8 + $0x4] sm:$0xf]
  %v239 = vld [vmem:[%s8 + $0x8] sm:$0xf]
  %v240 = vld [vmem:[%s8 + $0xc] sm:$0xf]
  %v241 = vld [vmem:[%s8 + $0x10] sm:$0xf]
  %v242 = vld [vmem:[%s8 + $0x14] sm:$0xf]
  %v243 = vld [vmem:[%s8 + $0x18] sm:$0xf]
  %v244 = vld [vmem:[%s8 + $0x1c] sm:$0xf]
  %v245 = vld [vmem:[%s9] sm:$0x1]
  %v247 = vlaneseq
  %v248 = vshrl.u32 %v247, 7
  %v249 = vsub.s32 0, %v248
  %v250 = vrot.slane %v245, %v249
  %v260 = vunpack.c.l.b16 %v237
  %v261 = vunpack.c.l.b16 %v238
  %v262 = vunpack.c.l.b16 %v239
  %v263 = vunpack.c.l.b16 %v240
  %v264 = vunpack.c.l.b16 %v241
  %v265 = vunpack.c.l.b16 %v242
  %v266 = vunpack.c.l.b16 %v243
  %v267 = vunpack.c.l.b16 %v244
  %v268 = vpack.c.b16 %v261, %v260
  %v269 = vpack.c.b16 %v263, %v262
  %v270 = vpack.c.b16 %v265, %v264
  %v271 = vpack.c.b16 %v267, %v266
  %vm276 = vcmask 523264
  %v278 = vsel %vm276, %v236, 0
  %280 = vmatprep.subr.bf16.mxu0 0
  %281 = vmatpush1.bf16.msra.mxu0 0
  %282 = vmatprep.subr.bf16.mxu0 0
  %283 = vmatpush1.bf16.msra.mxu0 0
  %284 = vmatprep.subr.bf16.mxu0 0
  %285 = vmatpush1.bf16.msra.mxu0 0
  %286 = vmatprep.subr.bf16.mxu0 0
  %287 = vmatpush1.bf16.msra.mxu0 0
  %288 = vmatprep.subr.bf16.mxu0 0
  %289 = vmatpush1.bf16.msra.mxu0 %v271
  %290 = vmatprep.subr.bf16.mxu0 0
  %291 = vmatpush1.bf16.msra.mxu0 %v270
  %292 = vmatprep.subr.bf16.mxu0 0
  %293 = vmatpush1.bf16.msra.mxu0 %v269
  %294 = vmatprep.subr.bf16.mxu0 0
  %295 = vmatpush1.bf16.msra.mxu0 %v268
  %296 = vmatprep.subr.bf16.mxu0 0
  %297 = vmatpush2.bf16.msra.mxu0 0
  %298 = vmatprep.subr.bf16.mxu0 0
  %299 = vmatpush2.bf16.msra.mxu0 0
  %300 = vmatprep.subr.bf16.mxu0 0
  %301 = vmatpush2.bf16.msra.mxu0 0
  %302 = vmatprep.subr.bf16.mxu0 0
  %303 = vmatpush2.bf16.msra.mxu0 0
  %304 = vmatprep.subr.bf16.mxu0 0
  %305 = vmatpush2.bf16.msra.mxu0 0
  %306 = vmatprep.subr.bf16.mxu0 0
  %307 = vmatpush2.bf16.msra.mxu0 0
  %308 = vmatprep.subr.bf16.mxu0 0
  %309 = vmatpush2.bf16.msra.mxu0 0
  %310 = vmatprep.subr.bf16.mxu0 0
  %311 = vmatpush2.bf16.msra.mxu0 0
  %312 = vmatprep.mubr.bf16.mxu0 0
  %313 = vmatmul.mubr.bf16.gmra.mxu0 %v278
  %v314 = vpop.f32.mrf.mxu0
  %v315 = vadd.f32 %v250, %v314
  %v316 = vpop.f32.mrf.mxu0
  %v317 = vpop.f32.mrf.mxu0
  %v318 = vadd.f32 %v250, %v317
  %v319 = vpop.f32.mrf.mxu0
  %320 = vdwg.mxu0
  %v321 = vadd.f32 %v164, %v315
  %v322 = vadd.f32 %v165, %v318
  %v323 = vsel %vm74, %v321, 0.0
  %324 = vadd.xlane.f32.xlu0 %v323
  %v325 = vpop.xlane.xlu0 %324
  %v326 = vsel %vm74, %v322, 0.0
  %327 = vadd.xlane.f32.xlu0 %v326
  %v328 = vpop.xlane.xlu0 %327
  %v329 = vmul.f32 %v325, %v127
  %v330 = vmul.f32 %v328, %v127
  %v331 = vsub.f32 %v321, %v329
  %v332 = vsub.f32 %v322, %v330
  %v333 = vmul.f32 %v331, %v331
  %v334 = vmul.f32 %v332, %v332
  %v335 = vsel %vm74, %v333, 0.0
  %336 = vadd.xlane.f32.xlu0 %v335
  %v337 = vpop.xlane.xlu0 %336
  %v338 = vsel %vm74, %v334, 0.0
  %339 = vadd.xlane.f32.xlu0 %v338
  %v340 = vpop.xlane.xlu0 %339
  %v341 = vmul.f32 %v337, %v127
  %v342 = vmul.f32 %v340, %v127
  %v343 = vadd.f32 %v341, 1e-05
  %v344 = vadd.f32 %v342, 1e-05
  %v345 = vrsqrt.pop %v343
  %v346 = vrsqrt.pop %v344
  %v347 = vmul.f32 %v331, %v345
  %v348 = vmul.f32 %v332, %v346
  %v349 = vld [vmem:[%s10] sm:$0x1]
  %v351 = vlaneseq
  %v352 = vshrl.u32 %v351, 7
  %v353 = vsub.s32 0, %v352
  %v354 = vrot.slane %v349, %v353
  %v356 = vmul.f32 %v347, %v354
  %v357 = vmul.f32 %v348, %v354
  %v358 = vld [vmem:[%s11] sm:$0x1]
  %v360 = vlaneseq
  %v361 = vshrl.u32 %v360, 7
  %v362 = vsub.s32 0, %v361
  %v363 = vrot.slane %v358, %v362
  %v365 = vadd.f32 %v356, %v363
  %v366 = vadd.f32 %v357, %v363
  %367 = vst.msk [vmem:[%s12] sm:$0xff] %vm74, %v365
  %368 = vst.msk [vmem:[%s12 + $0x8] sm:$0xff] %vm74, %v366
  // Predicated region
  $region50: #{encoder_forward.8} parent=0 // pred_check
    _
  $region51: #{encoder_forward.8} parent=0 // pred_check_branch
    %370 = sbr.rel (0) target = $region53
  $region52: #{encoder_forward.8} parent=0 // pred_region
    _
  $region53: #{encoder_forward.8} parent=0 // pred_fallthru
    _
  // Predicated region
  $region54: #{encoder_forward.8} parent=0 // pred_check
    _
  $region55: #{encoder_forward.8} parent=0 // pred_check_branch
    %372 = sbr.rel (0) target = $region57
  $region56: #{encoder_forward.8} parent=0 // pred_region
    _
  $region57: #{encoder_forward.8} parent=0 // pred_fallthru
    _

// kernel: encoder_forward.6
$region0: #{encoder_forward.6}
  #allocation0 [shape = 'u32[]', space=smem, size = 0x4, offset = 0x4, fixed_abs, tag = 'smem constant byte address 0x4 - core index']
  #allocation1 [shape = 'u32[144,128]{1,0:T(1,128)}', space=vmem, size = 0x12000, scoped, tag = 'internal scratch']
  %s0 = inlined_call_operand.vmem [shape: f32[16,32], index: 0, kind: input, shape index: {}]
  %s1 = inlined_call_operand.vmem [shape: bf16[32,96], index: 1, kind: input, shape index: {}]
  %s2 = inlined_call_operand.vmem [shape: bf16[16,96], index: 2, kind: output, shape index: {}]
  %s3 = sld [smem:[#allocation0]]
  $region18: #{encoder_forward.6} parent=0
    _
  %s5 = ssub.s32 1, %s3
  %s6 = scalar_select 0, %s5, %s3
  // Predicated region
  $region2: #{encoder_forward.6} parent=0 // pred_check
    _
  $region3: #{encoder_forward.6} parent=0 // pred_check_branch
    %8 = sbr.rel (0) target = $region5
  $region4: #{encoder_forward.6} parent=0 // pred_region
    _
  $region5: #{encoder_forward.6} parent=0 // pred_fallthru
    _
  // Predicated region
  $region6: #{encoder_forward.6} parent=0 // pred_check
    _
  $region7: #{encoder_forward.6} parent=0 // pred_check_branch
    %10 = sbr.rel (0) target = $region9
  $region8: #{encoder_forward.6} parent=0 // pred_region
    _
  $region9: #{encoder_forward.6} parent=0 // pred_fallthru
    _
  %v12 = vld [vmem:[%s0] sm:$0xff]
  %v13 = vld [vmem:[%s0 + $0x8] sm:$0xff]
  %v14 = vpack.c.bf16 %v13, %v12
  %v15 = vld [vmem:[%s1] sm:$0xf]
  %v16 = vld [vmem:[%s1 + $0x4] sm:$0xf]
  %v17 = vld [vmem:[%s1 + $0x8] sm:$0xf]
  %v18 = vld [vmem:[%s1 + $0xc] sm:$0xf]
  %v23 = vunpack.c.l.b16 %v15
  %v24 = vunpack.c.l.b16 %v16
  %v25 = vunpack.c.l.b16 %v17
  %v26 = vunpack.c.l.b16 %v18
  %v27 = vpack.c.b16 %v24, %v23
  %v28 = vpack.c.b16 %v26, %v25
  %vm31 = vcmask 261120
  %v33 = vsel %vm31, %v14, 0
  %35 = vmatprep.subr.bf16.mxu0 0
  %36 = vmatpush1.bf16.msra.mxu0 0
  %37 = vmatprep.subr.bf16.mxu0 0
  %38 = vmatpush1.bf16.msra.mxu0 0
  %39 = vmatprep.subr.bf16.mxu0 0
  %40 = vmatpush1.bf16.msra.mxu0 0
  %41 = vmatprep.subr.bf16.mxu0 0
  %42 = vmatpush1.bf16.msra.mxu0 0
  %43 = vmatprep.subr.bf16.mxu0 0
  %44 = vmatpush1.bf16.msra.mxu0 0
  %45 = vmatprep.subr.bf16.mxu0 0
  %46 = vmatpush1.bf16.msra.mxu0 0
  %47 = vmatprep.subr.bf16.mxu0 0
  %48 = vmatpush1.bf16.msra.mxu0 %v28
  %49 = vmatprep.subr.bf16.mxu0 0
  %50 = vmatpush1.bf16.msra.mxu0 %v27
  %51 = vmatprep.subr.bf16.mxu0 0
  %52 = vmatpush2.bf16.msra.mxu0 0
  %53 = vmatprep.subr.bf16.mxu0 0
  %54 = vmatpush2.bf16.msra.mxu0 0
  %55 = vmatprep.subr.bf16.mxu0 0
  %56 = vmatpush2.bf16.msra.mxu0 0
  %57 = vmatprep.subr.bf16.mxu0 0
  %58 = vmatpush2.bf16.msra.mxu0 0
  %59 = vmatprep.subr.bf16.mxu0 0
  %60 = vmatpush2.bf16.msra.mxu0 0
  %61 = vmatprep.subr.bf16.mxu0 0
  %62 = vmatpush2.bf16.msra.mxu0 0
  %63 = vmatprep.subr.bf16.mxu0 0
  %64 = vmatpush2.bf16.msra.mxu0 0
  %65 = vmatprep.subr.bf16.mxu0 0
  %66 = vmatpush2.bf16.msra.mxu0 0
  %67 = vmatprep.mubr.bf16.mxu0 0
  %68 = vmatmul.mubr.bf16.gmra.mxu0 %v33
  %v69 = vpop.f32.mrf.mxu0
  %v70 = vadd.f32 0.0, %v69
  %v71 = vpop.f32.mrf.mxu0
  %v72 = vpop.f32.mrf.mxu0
  %v73 = vadd.f32 0.0, %v72
  %v74 = vpop.f32.mrf.mxu0
  %75 = vdwg.mxu0
  %v76 = vpack.c.bf16 %v73, %v70
  %v78 = vunpack.c.l.b16 %v76
  %v79 = vunpack.c.h.b16 %v76
  %v80 = vpack.c.b16 %v78, %v78
  %v81 = vpack.c.b16 %v79, %v79
  %vm84 = vcmask 781312
  %85 = vst.msk [vmem:[%s2] sm:$0xf] %vm84, %v80
  %86 = vst.msk [vmem:[%s2 + $0x4] sm:$0xf] %vm84, %v81
  // Predicated region
  $region10: #{encoder_forward.6} parent=0 // pred_check
    _
  $region11: #{encoder_forward.6} parent=0 // pred_check_branch
    %88 = sbr.rel (0) target = $region13
  $region12: #{encoder_forward.6} parent=0 // pred_region
    _
  $region13: #{encoder_forward.6} parent=0 // pred_fallthru
    _
  // Predicated region
  $region14: #{encoder_forward.6} parent=0 // pred_check
    _
  $region15: #{encoder_forward.6} parent=0 // pred_check_branch
    %90 = sbr.rel (0) target = $region17
  $region16: #{encoder_forward.6} parent=0 // pred_region
    _
  $region17: #{encoder_forward.6} parent=0 // pred_fallthru
    _

// kernel: encoder_forward.7
$region0: #{encoder_forward.7}
  #allocation0 [shape = 'u32[]', space=smem, size = 0x4, offset = 0x4, fixed_abs, tag = 'smem constant byte address 0x4 - core index']
  #allocation1 [shape = 'u32[144,128]{1,0:T(1,128)}', space=vmem, size = 0x12000, scoped, tag = 'internal scratch']
  %s0 = inlined_call_operand.vmem [shape: bf16[8,8,8], index: 0, kind: input, shape index: {}]
  %s1 = inlined_call_operand.vmem [shape: bf16[8,8,8], index: 1, kind: input, shape index: {}]
  %s2 = inlined_call_operand.vmem [shape: bf16[8,8,8], index: 2, kind: input, shape index: {}]
  %s3 = inlined_call_operand.vmem [shape: f32[8,8,8], index: 3, kind: input, shape index: {}]
  %s4 = inlined_call_operand.vmem [shape: bf16[8,8,8], index: 4, kind: output, shape index: {}]
  %s5 = sld [smem:[#allocation0]]
  $region26: #{encoder_forward.7} parent=0
    _
  %s7 = ssub.s32 1, %s5
  %s8 = scalar_select 0, %s7, %s5
  // Predicated region
  $region2: #{encoder_forward.7} parent=0 // pred_check
    _
  $region3: #{encoder_forward.7} parent=0 // pred_check_branch
    %10 = sbr.rel (0) target = $region5
  $region4: #{encoder_forward.7} parent=0 // pred_region
    _
  $region5: #{encoder_forward.7} parent=0 // pred_fallthru
    _
  // Predicated region
  $region6: #{encoder_forward.7} parent=0 // pred_check
    _
  $region7: #{encoder_forward.7} parent=0 // pred_check_branch
    %12 = sbr.rel (0) target = $region9
  $region8: #{encoder_forward.7} parent=0 // pred_region
    _
  $region9: #{encoder_forward.7} parent=0 // pred_fallthru
    _
  // Predicated region
  $region10: #{encoder_forward.7} parent=0 // pred_check
    _
  $region11: #{encoder_forward.7} parent=0 // pred_check_branch
    %14 = sbr.rel (0) target = $region13
  $region12: #{encoder_forward.7} parent=0 // pred_region
    _
  $region13: #{encoder_forward.7} parent=0 // pred_fallthru
    _
  // Predicated region
  $region14: #{encoder_forward.7} parent=0 // pred_check
    _
  $region15: #{encoder_forward.7} parent=0 // pred_check_branch
    %16 = sbr.rel (0) target = $region17
  $region16: #{encoder_forward.7} parent=0 // pred_region
    _
  $region17: #{encoder_forward.7} parent=0 // pred_fallthru
    _
  %v18 = vld [vmem:[%s0] sm:$0xf]
  %v19 = vld [vmem:[%s0 + $0x4] sm:$0xf]
  %v20 = vld [vmem:[%s0 + $0x8] sm:$0xf]
  %v21 = vld [vmem:[%s0 + $0xc] sm:$0xf]
  %v22 = vld [vmem:[%s0 + $0x10] sm:$0xf]
  %v23 = vld [vmem:[%s0 + $0x14] sm:$0xf]
  %v24 = vld [vmem:[%s0 + $0x18] sm:$0xf]
  %v25 = vld [vmem:[%s0 + $0x1c] sm:$0xf]
  %v26 = vld [vmem:[%s1] sm:$0xf]
  %v27 = vld [vmem:[%s1 + $0x4] sm:$0xf]
  %v28 = vld [vmem:[%s1 + $0x8] sm:$0xf]
  %v29 = vld [vmem:[%s1 + $0xc] sm:$0xf]
  %v30 = vld [vmem:[%s1 + $0x10] sm:$0xf]
  %v31 = vld [vmem:[%s1 + $0x14] sm:$0xf]
  %v32 = vld [vmem:[%s1 + $0x18] sm:$0xf]
  %v33 = vld [vmem:[%s1 + $0x1c] sm:$0xf]
  %v34 = vld [vmem:[%s2] sm:$0xf]
  %v35 = vld [vmem:[%s2 + $0x4] sm:$0xf]
  %v36 = vld [vmem:[%s2 + $0x8] sm:$0xf]
  %v37 = vld [vmem:[%s2 + $0xc] sm:$0xf]
  %v38 = vld [vmem:[%s2 + $0x10] sm:$0xf]
  %v39 = vld [vmem:[%s2 + $0x14] sm:$0xf]
  %v40 = vld [vmem:[%s2 + $0x18] sm:$0xf]
  %v41 = vld [vmem:[%s2 + $0x1c] sm:$0xf]
  %vm42 = vcmask 64512
  %v44 = vsel %vm42, %v18, 0
  %v47 = vsel %vm42, %v26, 0
  %49 = vmatprep.subr.bf16.mxu0 0
  %50 = vmatpush1.bf16.xpose.msra.mxu0 0
  %51 = vmatprep.subr.bf16.mxu0 0
  %52 = vmatpush1.bf16.xpose.msra.mxu0 0
  %53 = vmatprep.subr.bf16.mxu0 0
  %54 = vmatpush1.bf16.xpose.msra.mxu0 0
  %55 = vmatprep.subr.bf16.mxu0 0
  %56 = vmatpush1.bf16.xpose.msra.mxu0 0
  %57 = vmatprep.subr.bf16.mxu0 0
  %58 = vmatpush1.bf16.xpose.msra.mxu0 0
  %59 = vmatprep.subr.bf16.mxu0 0
  %60 = vmatpush1.bf16.xpose.msra.mxu0 0
  %61 = vmatprep.subr.bf16.mxu0 0
  %62 = vmatpush1.bf16.xpose.msra.mxu0 0
  %63 = vmatprep.subr.bf16.mxu0 0
  %64 = vmatpush1.bf16.xpose.msra.mxu0 %v47
  %65 = vmatprep.subr.bf16.mxu0 0
  %66 = vmatpush2.bf16.xpose.msra.mxu0 0
  %67 = vmatprep.subr.bf16.mxu0 0
  %68 = vmatpush2.bf16.xpose.msra.mxu0 0
  %69 = vmatprep.subr.bf16.mxu0 0
  %70 = vmatpush2.bf16.xpose.msra.mxu0 0
  %71 = vmatprep.subr.bf16.mxu0 0
  %72 = vmatpush2.bf16.xpose.msra.mxu0 0
  %73 = vmatprep.subr.bf16.mxu0 0
  %74 = vmatpush2.bf16.xpose.msra.mxu0 0
  %75 = vmatprep.subr.bf16.mxu0 0
  %76 = vmatpush2.bf16.xpose.msra.mxu0 0
  %77 = vmatprep.subr.bf16.mxu0 0
  %78 = vmatpush2.bf16.xpose.msra.mxu0 0
  %79 = vmatprep.subr.bf16.mxu0 0
  %80 = vmatpush2.bf16.xpose.msra.mxu0 0
  %81 = vmatprep.mubr.bf16.mxu0 0
  %82 = vmatmul.mubr.bf16.gmra.mxu0 %v44
  %v83 = vpop.f32.mrf.mxu0
  %v84 = vadd.f32 0.0, %v83
  %v85 = vpop.f32.mrf.mxu0
  %v86 = vpop.f32.mrf.mxu0
  %v87 = vpop.f32.mrf.mxu0
  %88 = vdwg.mxu0
  %v90 = vsel %vm42, %v19, 0
  %v93 = vsel %vm42, %v27, 0
  %95 = vmatprep.subr.bf16.mxu0 0
  %96 = vmatpush1.bf16.xpose.msra.mxu0 0
  %97 = vmatprep.subr.bf16.mxu0 0
  %98 = vmatpush1.bf16.xpose.msra.mxu0 0
  %99 = vmatprep.subr.bf16.mxu0 0
  %100 = vmatpush1.bf16.xpose.msra.mxu0 0
  %101 = vmatprep.subr.bf16.mxu0 0
  %102 = vmatpush1.bf16.xpose.msra.mxu0 0
  %103 = vmatprep.subr.bf16.mxu0 0
  %104 = vmatpush1.bf16.xpose.msra.mxu0 0
  %105 = vmatprep.subr.bf16.mxu0 0
  %106 = vmatpush1.bf16.xpose.msra.mxu0 0
  %107 = vmatprep.subr.bf16.mxu0 0
  %108 = vmatpush1.bf16.xpose.msra.mxu0 0
  %109 = vmatprep.subr.bf16.mxu0 0
  %110 = vmatpush1.bf16.xpose.msra.mxu0 %v93
  %111 = vmatprep.subr.bf16.mxu0 0
  %112 = vmatpush2.bf16.xpose.msra.mxu0 0
  %113 = vmatprep.subr.bf16.mxu0 0
  %114 = vmatpush2.bf16.xpose.msra.mxu0 0
  %115 = vmatprep.subr.bf16.mxu0 0
  %116 = vmatpush2.bf16.xpose.msra.mxu0 0
  %117 = vmatprep.subr.bf16.mxu0 0
  %118 = vmatpush2.bf16.xpose.msra.mxu0 0
  %119 = vmatprep.subr.bf16.mxu0 0
  %120 = vmatpush2.bf16.xpose.msra.mxu0 0
  %121 = vmatprep.subr.bf16.mxu0 0
  %122 = vmatpush2.bf16.xpose.msra.mxu0 0
  %123 = vmatprep.subr.bf16.mxu0 0
  %124 = vmatpush2.bf16.xpose.msra.mxu0 0
  %125 = vmatprep.subr.bf16.mxu0 0
  %126 = vmatpush2.bf16.xpose.msra.mxu0 0
  %127 = vmatprep.mubr.bf16.mxu0 0
  %128 = vmatmul.mubr.bf16.gmra.mxu0 %v90
  %v129 = vpop.f32.mrf.mxu0
  %v130 = vadd.f32 0.0, %v129
  %v131 = vpop.f32.mrf.mxu0
  %v132 = vpop.f32.mrf.mxu0
  %v133 = vpop.f32.mrf.mxu0
  %134 = vdwg.mxu0
  %v136 = vsel %vm42, %v20, 0
  %v139 = vsel %vm42, %v28, 0
  %141 = vmatprep.subr.bf16.mxu0 0
  %142 = vmatpush1.bf16.xpose.msra.mxu0 0
  %143 = vmatprep.subr.bf16.mxu0 0
  %144 = vmatpush1.bf16.xpose.msra.mxu0 0
  %145 = vmatprep.subr.bf16.mxu0 0
  %146 = vmatpush1.bf16.xpose.msra.mxu0 0
  %147 = vmatprep.subr.bf16.mxu0 0
  %148 = vmatpush1.bf16.xpose.msra.mxu0 0
  %149 = vmatprep.subr.bf16.mxu0 0
  %150 = vmatpush1.bf16.xpose.msra.mxu0 0
  %151 = vmatprep.subr.bf16.mxu0 0
  %152 = vmatpush1.bf16.xpose.msra.mxu0 0
  %153 = vmatprep.subr.bf16.mxu0 0
  %154 = vmatpush1.bf16.xpose.msra.mxu0 0
  %155 = vmatprep.subr.bf16.mxu0 0
  %156 = vmatpush1.bf16.xpose.msra.mxu0 %v139
  %157 = vmatprep.subr.bf16.mxu0 0
  %158 = vmatpush2.bf16.xpose.msra.mxu0 0
  %159 = vmatprep.subr.bf16.mxu0 0
  %160 = vmatpush2.bf16.xpose.msra.mxu0 0
  %161 = vmatprep.subr.bf16.mxu0 0
  %162 = vmatpush2.bf16.xpose.msra.mxu0 0
  %163 = vmatprep.subr.bf16.mxu0 0
  %164 = vmatpush2.bf16.xpose.msra.mxu0 0
  %165 = vmatprep.subr.bf16.mxu0 0
  %166 = vmatpush2.bf16.xpose.msra.mxu0 0
  %167 = vmatprep.subr.bf16.mxu0 0
  %168 = vmatpush2.bf16.xpose.msra.mxu0 0
  %169 = vmatprep.subr.bf16.mxu0 0
  %170 = vmatpush2.bf16.xpose.msra.mxu0 0
  %171 = vmatprep.subr.bf16.mxu0 0
  %172 = vmatpush2.bf16.xpose.msra.mxu0 0
  %173 = vmatprep.mubr.bf16.mxu0 0
  %174 = vmatmul.mubr.bf16.gmra.mxu0 %v136
  %v175 = vpop.f32.mrf.mxu0
  %v176 = vadd.f32 0.0, %v175
  %v177 = vpop.f32.mrf.mxu0
  %v178 = vpop.f32.mrf.mxu0
  %v179 = vpop.f32.mrf.mxu0
  %180 = vdwg.mxu0
  %v182 = vsel %vm42, %v21, 0
  %v185 = vsel %vm42, %v29, 0
  %187 = vmatprep.subr.bf16.mxu0 0
  %188 = vmatpush1.bf16.xpose.msra.mxu0 0
  %189 = vmatprep.subr.bf16.mxu0 0
  %190 = vmatpush1.bf16.xpose.msra.mxu0 0
  %191 = vmatprep.subr.bf16.mxu0 0
  %192 = vmatpush1.bf16.xpose.msra.mxu0 0
  %193 = vmatprep.subr.bf16.mxu0 0
  %194 = vmatpush1.bf16.xpose.msra.mxu0 0
  %195 = vmatprep.subr.bf16.mxu0 0
  %196 = vmatpush1.bf16.xpose.msra.mxu0 0
  %197 = vmatprep.subr.bf16.mxu0 0
  %198 = vmatpush1.bf16.xpose.msra.mxu0 0
  %199 = vmatprep.subr.bf16.mxu0 0
  %200 = vmatpush1.bf16.xpose.msra.mxu0 0
  %201 = vmatprep.subr.bf16.mxu0 0
  %202 = vmatpush1.bf16.xpose.msra.mxu0 %v185
  %203 = vmatprep.subr.bf16.mxu0 0
  %204 = vmatpush2.bf16.xpose.msra.mxu0 0
  %205 = vmatprep.subr.bf16.mxu0 0
  %206 = vmatpush2.bf16.xpose.msra.mxu0 0
  %207 = vmatprep.subr.bf16.mxu0 0
  %208 = vmatpush2.bf16.xpose.msra.mxu0 0
  %209 = vmatprep.subr.bf16.mxu0 0
  %210 = vmatpush2.bf16.xpose.msra.mxu0 0
  %211 = vmatprep.subr.bf16.mxu0 0
  %212 = vmatpush2.bf16.xpose.msra.mxu0 0
  %213 = vmatprep.subr.bf16.mxu0 0
  %214 = vmatpush2.bf16.xpose.msra.mxu0 0
  %215 = vmatprep.subr.bf16.mxu0 0
  %216 = vmatpush2.bf16.xpose.msra.mxu0 0
  %217 = vmatprep.subr.bf16.mxu0 0
  %218 = vmatpush2.bf16.xpose.msra.mxu0 0
  %219 = vmatprep.mubr.bf16.mxu0 0
  %220 = vmatmul.mubr.bf16.gmra.mxu0 %v182
  %v221 = vpop.f32.mrf.mxu0
  %v222 = vadd.f32 0.0, %v221
  %v223 = vpop.f32.mrf.mxu0
  %v224 = vpop.f32.mrf.mxu0
  %v225 = vpop.f32.mrf.mxu0
  %226 = vdwg.mxu0
  %v228 = vsel %vm42, %v22, 0
  %v231 = vsel %vm42, %v30, 0
  %233 = vmatprep.subr.bf16.mxu0 0
  %234 = vmatpush1.bf16.xpose.msra.mxu0 0
  %235 = vmatprep.subr.bf16.mxu0 0
  %236 = vmatpush1.bf16.xpose.msra.mxu0 0
  %237 = vmatprep.subr.bf16.mxu0 0
  %238 = vmatpush1.bf16.xpose.msra.mxu0 0
  %239 = vmatprep.subr.bf16.mxu0 0
  %240 = vmatpush1.bf16.xpose.msra.mxu0 0
  %241 = vmatprep.subr.bf16.mxu0 0
  %242 = vmatpush1.bf16.xpose.msra.mxu0 0
  %243 = vmatprep.subr.bf16.mxu0 0
  %244 = vmatpush1.bf16.xpose.msra.mxu0 0
  %245 = vmatprep.subr.bf16.mxu0 0
  %246 = vmatpush1.bf16.xpose.msra.mxu0 0
  %247 = vmatprep.subr.bf16.mxu0 0
  %248 = vmatpush1.bf16.xpose.msra.mxu0 %v231
  %249 = vmatprep.subr.bf16.mxu0 0
  %250 = vmatpush2.bf16.xpose.msra.mxu0 0
  %251 = vmatprep.subr.bf16.mxu0 0
  %252 = vmatpush2.bf16.xpose.msra.mxu0 0
  %253 = vmatprep.subr.bf16.mxu0 0
  %254 = vmatpush2.bf16.xpose.msra.mxu0 0
  %255 = vmatprep.subr.bf16.mxu0 0
  %256 = vmatpush2.bf16.xpose.msra.mxu0 0
  %257 = vmatprep.subr.bf16.mxu0 0
  %258 = vmatpush2.bf16.xpose.msra.mxu0 0
  %259 = vmatprep.subr.bf16.mxu0 0
  %260 = vmatpush2.bf16.xpose.msra.mxu0 0
  %261 = vmatprep.subr.bf16.mxu0 0
  %262 = vmatpush2.bf16.xpose.msra.mxu0 0
  %263 = vmatprep.subr.bf16.mxu0 0
  %264 = vmatpush2.bf16.xpose.msra.mxu0 0
  %265 = vmatprep.mubr.bf16.mxu0 0
  %266 = vmatmul.mubr.bf16.gmra.mxu0 %v228
  %v267 = vpop.f32.mrf.mxu0
  %v268 = vadd.f32 0.0, %v267
  %v269 = vpop.f32.mrf.mxu0
  %v270 = vpop.f32.mrf.mxu0
  %v271 = vpop.f32.mrf.mxu0
  %272 = vdwg.mxu0
  %v274 = vsel %vm42, %v23, 0
  %v277 = vsel %vm42, %v31, 0
  %279 = vmatprep.subr.bf16.mxu0 0
  %280 = vmatpush1.bf16.xpose.msra.mxu0 0
  %281 = vmatprep.subr.bf16.mxu0 0
  %282 = vmatpush1.bf16.xpose.msra.mxu0 0
  %283 = vmatprep.subr.bf16.mxu0 0
  %284 = vmatpush1.bf16.xpose.msra.mxu0 0
  %285 = vmatprep.subr.bf16.mxu0 0
  %286 = vmatpush1.bf16.xpose.msra.mxu0 0
  %287 = vmatprep.subr.bf16.mxu0 0
  %288 = vmatpush1.bf16.xpose.msra.mxu0 0
  %289 = vmatprep.subr.bf16.mxu0 0
  %290 = vmatpush1.bf16.xpose.msra.mxu0 0
  %291 = vmatprep.subr.bf16.mxu0 0
  %292 = vmatpush1.bf16.xpose.msra.mxu0 0
  %293 = vmatprep.subr.bf16.mxu0 0
  %294 = vmatpush1.bf16.xpose.msra.mxu0 %v277
  %295 = vmatprep.subr.bf16.mxu0 0
  %296 = vmatpush2.bf16.xpose.msra.mxu0 0
  %297 = vmatprep.subr.bf16.mxu0 0
  %298 = vmatpush2.bf16.xpose.msra.mxu0 0
  %299 = vmatprep.subr.bf16.mxu0 0
  %300 = vmatpush2.bf16.xpose.msra.mxu0 0
  %301 = vmatprep.subr.bf16.mxu0 0
  %302 = vmatpush2.bf16.xpose.msra.mxu0 0
  %303 = vmatprep.subr.bf16.mxu0 0
  %304 = vmatpush2.bf16.xpose.msra.mxu0 0
  %305 = vmatprep.subr.bf16.mxu0 0
  %306 = vmatpush2.bf16.xpose.msra.mxu0 0
  %307 = vmatprep.subr.bf16.mxu0 0
  %308 = vmatpush2.bf16.xpose.msra.mxu0 0
  %309 = vmatprep.subr.bf16.mxu0 0
  %310 = vmatpush2.bf16.xpose.msra.mxu0 0
  %311 = vmatprep.mubr.bf16.mxu0 0
  %312 = vmatmul.mubr.bf16.gmra.mxu0 %v274
  %v313 = vpop.f32.mrf.mxu0
  %v314 = vadd.f32 0.0, %v313
  %v315 = vpop.f32.mrf.mxu0
  %v316 = vpop.f32.mrf.mxu0
  %v317 = vpop.f32.mrf.mxu0
  %318 = vdwg.mxu0
  %v320 = vsel %vm42, %v24, 0
  %v323 = vsel %vm42, %v32, 0
  %325 = vmatprep.subr.bf16.mxu0 0
  %326 = vmatpush1.bf16.xpose.msra.mxu0 0
  %327 = vmatprep.subr.bf16.mxu0 0
  %328 = vmatpush1.bf16.xpose.msra.mxu0 0
  %329 = vmatprep.subr.bf16.mxu0 0
  %330 = vmatpush1.bf16.xpose.msra.mxu0 0
  %331 = vmatprep.subr.bf16.mxu0 0
  %332 = vmatpush1.bf16.xpose.msra.mxu0 0
  %333 = vmatprep.subr.bf16.mxu0 0
  %334 = vmatpush1.bf16.xpose.msra.mxu0 0
  %335 = vmatprep.subr.bf16.mxu0 0
  %336 = vmatpush1.bf16.xpose.msra.mxu0 0
  %337 = vmatprep.subr.bf16.mxu0 0
  %338 = vmatpush1.bf16.xpose.msra.mxu0 0
  %339 = vmatprep.subr.bf16.mxu0 0
  %340 = vmatpush1.bf16.xpose.msra.mxu0 %v323
  %341 = vmatprep.subr.bf16.mxu0 0
  %342 = vmatpush2.bf16.xpose.msra.mxu0 0
  %343 = vmatprep.subr.bf16.mxu0 0
  %344 = vmatpush2.bf16.xpose.msra.mxu0 0
  %345 = vmatprep.subr.bf16.mxu0 0
  %346 = vmatpush2.bf16.xpose.msra.mxu0 0
  %347 = vmatprep.subr.bf16.mxu0 0
  %348 = vmatpush2.bf16.xpose.msra.mxu0 0
  %349 = vmatprep.subr.bf16.mxu0 0
  %350 = vmatpush2.bf16.xpose.msra.mxu0 0
  %351 = vmatprep.subr.bf16.mxu0 0
  %352 = vmatpush2.bf16.xpose.msra.mxu0 0
  %353 = vmatprep.subr.bf16.mxu0 0
  %354 = vmatpush2.bf16.xpose.msra.mxu0 0
  %355 = vmatprep.subr.bf16.mxu0 0
  %356 = vmatpush2.bf16.xpose.msra.mxu0 0
  %357 = vmatprep.mubr.bf16.mxu0 0
  %358 = vmatmul.mubr.bf16.gmra.mxu0 %v320
  %v359 = vpop.f32.mrf.mxu0
  %v360 = vadd.f32 0.0, %v359
  %v361 = vpop.f32.mrf.mxu0
  %v362 = vpop.f32.mrf.mxu0
  %v363 = vpop.f32.mrf.mxu0
  %364 = vdwg.mxu0
  %v366 = vsel %vm42, %v25, 0
  %v369 = vsel %vm42, %v33, 0
  %371 = vmatprep.subr.bf16.mxu0 0
  %372 = vmatpush1.bf16.xpose.msra.mxu0 0
  %373 = vmatprep.subr.bf16.mxu0 0
  %374 = vmatpush1.bf16.xpose.msra.mxu0 0
  %375 = vmatprep.subr.bf16.mxu0 0
  %376 = vmatpush1.bf16.xpose.msra.mxu0 0
  %377 = vmatprep.subr.bf16.mxu0 0
  %378 = vmatpush1.bf16.xpose.msra.mxu0 0
  %379 = vmatprep.subr.bf16.mxu0 0
  %380 = vmatpush1.bf16.xpose.msra.mxu0 0
  %381 = vmatprep.subr.bf16.mxu0 0
  %382 = vmatpush1.bf16.xpose.msra.mxu0 0
  %383 = vmatprep.subr.bf16.mxu0 0
  %384 = vmatpush1.bf16.xpose.msra.mxu0 0
  %385 = vmatprep.subr.bf16.mxu0 0
  %386 = vmatpush1.bf16.xpose.msra.mxu0 %v369
  %387 = vmatprep.subr.bf16.mxu0 0
  %388 = vmatpush2.bf16.xpose.msra.mxu0 0
  %389 = vmatprep.subr.bf16.mxu0 0
  %390 = vmatpush2.bf16.xpose.msra.mxu0 0
  %391 = vmatprep.subr.bf16.mxu0 0
  %392 = vmatpush2.bf16.xpose.msra.mxu0 0
  %393 = vmatprep.subr.bf16.mxu0 0
  %394 = vmatpush2.bf16.xpose.msra.mxu0 0
  %395 = vmatprep.subr.bf16.mxu0 0
  %396 = vmatpush2.bf16.xpose.msra.mxu0 0
  %397 = vmatprep.subr.bf16.mxu0 0
  %398 = vmatpush2.bf16.xpose.msra.mxu0 0
  %399 = vmatprep.subr.bf16.mxu0 0
  %400 = vmatpush2.bf16.xpose.msra.mxu0 0
  %401 = vmatprep.subr.bf16.mxu0 0
  %402 = vmatpush2.bf16.xpose.msra.mxu0 0
  %403 = vmatprep.mubr.bf16.mxu0 0
  %404 = vmatmul.mubr.bf16.gmra.mxu0 %v366
  %v405 = vpop.f32.mrf.mxu0
  %v406 = vadd.f32 0.0, %v405
  %v407 = vpop.f32.mrf.mxu0
  %v408 = vpop.f32.mrf.mxu0
  %v409 = vpop.f32.mrf.mxu0
  %410 = vdwg.mxu0
  %v411 = vmul.f32 %v84, 0.35355338
  %v412 = vmul.f32 %v130, 0.35355338
  %v413 = vmul.f32 %v176, 0.35355338
  %v414 = vmul.f32 %v222, 0.35355338
  %v415 = vmul.f32 %v268, 0.35355338
  %v416 = vmul.f32 %v314, 0.35355338
  %v417 = vmul.f32 %v360, 0.35355338
  %v418 = vmul.f32 %v406, 0.35355338
  %v419 = vld [vmem:[%s3] sm:$0xff]
  %v420 = vld [vmem:[%s3 + $0x8] sm:$0xff]
  %v421 = vld [vmem:[%s3 + $0x10] sm:$0xff]
  %v422 = vld [vmem:[%s3 + $0x18] sm:$0xff]
  %v423 = vld [vmem:[%s3 + $0x20] sm:$0xff]
  %v424 = vld [vmem:[%s3 + $0x28] sm:$0xff]
  %v425 = vld [vmem:[%s3 + $0x30] sm:$0xff]
  %v426 = vld [vmem:[%s3 + $0x38] sm:$0xff]
  %vm427 = vcmp.ne.f32.partialorder %v419, 0.0
  %vm428 = vcmp.ne.f32.partialorder %v420, 0.0
  %vm429 = vcmp.ne.f32.partialorder %v421, 0.0
  %vm430 = vcmp.ne.f32.partialorder %v422, 0.0
  %vm431 = vcmp.ne.f32.partialorder %v423, 0.0
  %vm432 = vcmp.ne.f32.partialorder %v424, 0.0
  %vm433 = vcmp.ne.f32.partialorder %v425, 0.0
  %vm434 = vcmp.ne.f32.partialorder %v426, 0.0
  %v435 = vsel %vm427, -1e+09, %v411
  %v436 = vsel %vm428, -1e+09, %v412
  %v437 = vsel %vm429, -1e+09, %v413
  %v438 = vsel %vm430, -1e+09, %v414
  %v439 = vsel %vm431, -1e+09, %v415
  %v440 = vsel %vm432, -1e+09, %v416
  %v441 = vsel %vm433, -1e+09, %v417
  %v442 = vsel %vm434, -1e+09, %v418
  %v443 = vsel %vm42, %v435, -inf
  %444 = vmax.xlane.f32.xlu0 %v443
  %v445 = vpop.xlane.xlu0 %444
  %v446 = vsel %vm42, %v436, -inf
  %447 = vmax.xlane.f32.xlu0 %v446
  %v448 = vpop.xlane.xlu0 %447
  %v449 = vsel %vm42, %v437, -inf
  %450 = vmax.xlane.f32.xlu0 %v449
  %v451 = vpop.xlane.xlu0 %450
  %v452 = vsel %vm42, %v438, -inf
  %453 = vmax.xlane.f32.xlu0 %v452
  %v454 = vpop.xlane.xlu0 %453
  %v455 = vsel %vm42, %v439, -inf
  %456 = vmax.xlane.f32.xlu0 %v455
  %v457 = vpop.xlane.xlu0 %456
  %v458 = vsel %vm42, %v440, -inf
  %459 = vmax.xlane.f32.xlu0 %v458
  %v460 = vpop.xlane.xlu0 %459
  %v461 = vsel %vm42, %v441, -inf
  %462 = vmax.xlane.f32.xlu0 %v461
  %v463 = vpop.xlane.xlu0 %462
  %v464 = vsel %vm42, %v442, -inf
  %465 = vmax.xlane.f32.xlu0 %v464
  %v466 = vpop.xlane.xlu0 %465
  %v467 = vsub.f32 %v435, %v445
  %v468 = vsub.f32 %v436, %v448
  %v469 = vsub.f32 %v437, %v451
  %v470 = vsub.f32 %v438, %v454
  %v471 = vsub.f32 %v439, %v457
  %v472 = vsub.f32 %v440, %v460
  %v473 = vsub.f32 %v441, %v463
  %v474 = vsub.f32 %v442, %v466
  %v475 = vmul.f32 %v467, 1.442695
  %v476 = vpow.pop %v475
  %v477 = vmul.f32 %v468, 1.442695
  %v478 = vpow.pop %v477
  %v479 = vmul.f32 %v469, 1.442695
  %v480 = vpow.pop %v479
  %v481 = vmul.f32 %v470, 1.442695
  %v482 = vpow.pop %v481
  %v483 = vmul.f32 %v471, 1.442695
  %v484 = vpow.pop %v483
  %v485 = vmul.f32 %v472, 1.442695
  %v486 = vpow.pop %v485
  %v487 = vmul.f32 %v473, 1.442695
  %v488 = vpow.pop %v487
  %v489 = vmul.f32 %v474, 1.442695
  %v490 = vpow.pop %v489
  %v491 = vsel %vm42, %v476, 0.0
  %492 = vadd.xlane.f32.xlu0 %v491
  %v493 = vpop.xlane.xlu0 %492
  %v494 = vsel %vm42, %v478, 0.0
  %495 = vadd.xlane.f32.xlu0 %v494
  %v496 = vpop.xlane.xlu0 %495
  %v497 = vsel %vm42, %v480, 0.0
  %498 = vadd.xlane.f32.xlu0 %v497
  %v499 = vpop.xlane.xlu0 %498
  %v500 = vsel %vm42, %v482, 0.0
  %501 = vadd.xlane.f32.xlu0 %v500
  %v502 = vpop.xlane.xlu0 %501
  %v503 = vsel %vm42, %v484, 0.0
  %504 = vadd.xlane.f32.xlu0 %v503
  %v505 = vpop.xlane.xlu0 %504
  %v506 = vsel %vm42, %v486, 0.0
  %507 = vadd.xlane.f32.xlu0 %v506
  %v508 = vpop.xlane.xlu0 %507
  %v509 = vsel %vm42, %v488, 0.0
  %510 = vadd.xlane.f32.xlu0 %v509
  %v511 = vpop.xlane.xlu0 %510
  %v512 = vsel %vm42, %v490, 0.0
  %513 = vadd.xlane.f32.xlu0 %v512
  %v514 = vpop.xlane.xlu0 %513
  %v515 = vrcp.pop %v493
  %v516 = vrcp.pop %v496
  %v517 = vrcp.pop %v499
  %v518 = vrcp.pop %v502
  %v519 = vrcp.pop %v505
  %v520 = vrcp.pop %v508
  %v521 = vrcp.pop %v511
  %v522 = vrcp.pop %v514
  %v523 = vmul.f32 %v476, %v515
  %v524 = vmul.f32 %v478, %v516
  %v525 = vmul.f32 %v480, %v517
  %v526 = vmul.f32 %v482, %v518
  %v527 = vmul.f32 %v484, %v519
  %v528 = vmul.f32 %v486, %v520
  %v529 = vmul.f32 %v488, %v521
  %v530 = vmul.f32 %v490, %v522
  %v531 = vpack.c.bf16 %v523, %v523
  %v532 = vpack.c.bf16 %v524, %v524
  %v533 = vpack.c.bf16 %v525, %v525
  %v534 = vpack.c.bf16 %v526, %v526
  %v535 = vpack.c.bf16 %v527, %v527
  %v536 = vpack.c.bf16 %v528, %v528
  %v537 = vpack.c.bf16 %v529, %v529
  %v538 = vpack.c.bf16 %v530, %v530
  %v540 = vsel %vm42, %v531, 0
  %vm542 = vcmask 1043456
  %v544 = vsel %vm542, %v34, 0
  %546 = vmatprep.subr.bf16.mxu0 0
  %547 = vmatpush1.bf16.msra.mxu0 0
  %548 = vmatprep.subr.bf16.mxu0 0
  %549 = vmatpush1.bf16.msra.mxu0 0
  %550 = vmatprep.subr.bf16.mxu0 0
  %551 = vmatpush1.bf16.msra.mxu0 0
  %552 = vmatprep.subr.bf16.mxu0 0
  %553 = vmatpush1.bf16.msra.mxu0 0
  %554 = vmatprep.subr.bf16.mxu0 0
  %555 = vmatpush1.bf16.msra.mxu0 0
  %556 = vmatprep.subr.bf16.mxu0 0
  %557 = vmatpush1.bf16.msra.mxu0 0
  %558 = vmatprep.subr.bf16.mxu0 0
  %559 = vmatpush1.bf16.msra.mxu0 0
  %560 = vmatprep.subr.bf16.mxu0 0
  %561 = vmatpush1.bf16.msra.mxu0 %v544
  %562 = vmatprep.subr.bf16.mxu0 0
  %563 = vmatpush2.bf16.msra.mxu0 0
  %564 = vmatprep.subr.bf16.mxu0 0
  %565 = vmatpush2.bf16.msra.mxu0 0
  %566 = vmatprep.subr.bf16.mxu0 0
  %567 = vmatpush2.bf16.msra.mxu0 0
  %568 = vmatprep.subr.bf16.mxu0 0
  %569 = vmatpush2.bf16.msra.mxu0 0
  %570 = vmatprep.subr.bf16.mxu0 0
  %571 = vmatpush2.bf16.msra.mxu0 0
  %572 = vmatprep.subr.bf16.mxu0 0
  %573 = vmatpush2.bf16.msra.mxu0 0
  %574 = vmatprep.subr.bf16.mxu0 0
  %575 = vmatpush2.bf16.msra.mxu0 0
  %576 = vmatprep.subr.bf16.mxu0 0
  %577 = vmatpush2.bf16.msra.mxu0 0
  %578 = vmatprep.mubr.bf16.mxu0 0
  %579 = vmatmul.mubr.bf16.gmra.mxu0 %v540
  %v580 = vpop.f32.mrf.mxu0
  %v581 = vadd.f32 0.0, %v580
  %v582 = vpop.f32.mrf.mxu0
  %v583 = vpop.f32.mrf.mxu0
  %v584 = vpop.f32.mrf.mxu0
  %585 = vdwg.mxu0
  %v587 = vsel %vm42, %v532, 0
  %v590 = vsel %vm542, %v35, 0
  %592 = vmatprep.subr.bf16.mxu0 0
  %593 = vmatpush1.bf16.msra.mxu0 0
  %594 = vmatprep.subr.bf16.mxu0 0
  %595 = vmatpush1.bf16.msra.mxu0 0
  %596 = vmatprep.subr.bf16.mxu0 0
  %597 = vmatpush1.bf16.msra.mxu0 0
  %598 = vmatprep.subr.bf16.mxu0 0
  %599 = vmatpush1.bf16.msra.mxu0 0
  %600 = vmatprep.subr.bf16.mxu0 0
  %601 = vmatpush1.bf16.msra.mxu0 0
  %602 = vmatprep.subr.bf16.mxu0 0
  %603 = vmatpush1.bf16.msra.mxu0 0
  %604 = vmatprep.subr.bf16.mxu0 0
  %605 = vmatpush1.bf16.msra.mxu0 0
  %606 = vmatprep.subr.bf16.mxu0 0
  %607 = vmatpush1.bf16.msra.mxu0 %v590
  %608 = vmatprep.subr.bf16.mxu0 0
  %609 = vmatpush2.bf16.msra.mxu0 0
  %610 = vmatprep.subr.bf16.mxu0 0
  %611 = vmatpush2.bf16.msra.mxu0 0
  %612 = vmatprep.subr.bf16.mxu0 0
  %613 = vmatpush2.bf16.msra.mxu0 0
  %614 = vmatprep.subr.bf16.mxu0 0
  %615 = vmatpush2.bf16.msra.mxu0 0
  %616 = vmatprep.subr.bf16.mxu0 0
  %617 = vmatpush2.bf16.msra.mxu0 0
  %618 = vmatprep.subr.bf16.mxu0 0
  %619 = vmatpush2.bf16.msra.mxu0 0
  %620 = vmatprep.subr.bf16.mxu0 0
  %621 = vmatpush2.bf16.msra.mxu0 0
  %622 = vmatprep.subr.bf16.mxu0 0
  %623 = vmatpush2.bf16.msra.mxu0 0
  %624 = vmatprep.mubr.bf16.mxu0 0
  %625 = vmatmul.mubr.bf16.gmra.mxu0 %v587
  %v626 = vpop.f32.mrf.mxu0
  %v627 = vadd.f32 0.0, %v626
  %v628 = vpop.f32.mrf.mxu0
  %v629 = vpop.f32.mrf.mxu0
  %v630 = vpop.f32.mrf.mxu0
  %631 = vdwg.mxu0
  %v633 = vsel %vm42, %v533, 0
  %v636 = vsel %vm542, %v36, 0
  %638 = vmatprep.subr.bf16.mxu0 0
  %639 = vmatpush1.bf16.msra.mxu0 0
  %640 = vmatprep.subr.bf16.mxu0 0
  %641 = vmatpush1.bf16.msra.mxu0 0
  %642 = vmatprep.subr.bf16.mxu0 0
  %643 = vmatpush1.bf16.msra.mxu0 0
  %644 = vmatprep.subr.bf16.mxu0 0
  %645 = vmatpush1.bf16.msra.mxu0 0
  %646 = vmatprep.subr.bf16.mxu0 0
  %647 = vmatpush1.bf16.msra.mxu0 0
  %648 = vmatprep.subr.bf16.mxu0 0
  %649 = vmatpush1.bf16.msra.mxu0 0
  %650 = vmatprep.subr.bf16.mxu0 0
  %651 = vmatpush1.bf16.msra.mxu0 0
  %652 = vmatprep.subr.bf16.mxu0 0
  %653 = vmatpush1.bf16.msra.mxu0 %v636
  %654 = vmatprep.subr.bf16.mxu0 0
  %655 = vmatpush2.bf16.msra.mxu0 0
  %656 = vmatprep.subr.bf16.mxu0 0
  %657 = vmatpush2.bf16.msra.mxu0 0
  %658 = vmatprep.subr.bf16.mxu0 0
  %659 = vmatpush2.bf16.msra.mxu0 0
  %660 = vmatprep.subr.bf16.mxu0 0
  %661 = vmatpush2.bf16.msra.mxu0 0
  %662 = vmatprep.subr.bf16.mxu0 0
  %663 = vmatpush2.bf16.msra.mxu0 0
  %664 = vmatprep.subr.bf16.mxu0 0
  %665 = vmatpush2.bf16.msra.mxu0 0
  %666 = vmatprep.subr.bf16.mxu0 0
  %667 = vmatpush2.bf16.msra.mxu0 0
  %668 = vmatprep.subr.bf16.mxu0 0
  %669 = vmatpush2.bf16.msra.mxu0 0
  %670 = vmatprep.mubr.bf16.mxu0 0
  %671 = vmatmul.mubr.bf16.gmra.mxu0 %v633
  %v672 = vpop.f32.mrf.mxu0
  %v673 = vadd.f32 0.0, %v672
  %v674 = vpop.f32.mrf.mxu0
  %v675 = vpop.f32.mrf.mxu0
  %v676 = vpop.f32.mrf.mxu0
  %677 = vdwg.mxu0
  %v679 = vsel %vm42, %v534, 0
  %v682 = vsel %vm542, %v37, 0
  %684 = vmatprep.subr.bf16.mxu0 0
  %685 = vmatpush1.bf16.msra.mxu0 0
  %686 = vmatprep.subr.bf16.mxu0 0
  %687 = vmatpush1.bf16.msra.mxu0 0
  %688 = vmatprep.subr.bf16.mxu0 0
  %689 = vmatpush1.bf16.msra.mxu0 0
  %690 = vmatprep.subr.bf16.mxu0 0
  %691 = vmatpush1.bf16.msra.mxu0 0
  %692 = vmatprep.subr.bf16.mxu0 0
  %693 = vmatpush1.bf16.msra.mxu0 0
  %694 = vmatprep.subr.bf16.mxu0 0
  %695 = vmatpush1.bf16.msra.mxu0 0
  %696 = vmatprep.subr.bf16.mxu0 0
  %697 = vmatpush1.bf16.msra.mxu0 0
  %698 = vmatprep.subr.bf16.mxu0 0
  %699 = vmatpush1.bf16.msra.mxu0 %v682
  %700 = vmatprep.subr.bf16.mxu0 0
  %701 = vmatpush2.bf16.msra.mxu0 0
  %702 = vmatprep.subr.bf16.mxu0 0
  %703 = vmatpush2.bf16.msra.mxu0 0
  %704 = vmatprep.subr.bf16.mxu0 0
  %705 = vmatpush2.bf16.msra.mxu0 0
  %706 = vmatprep.subr.bf16.mxu0 0
  %707 = vmatpush2.bf16.msra.mxu0 0
  %708 = vmatprep.subr.bf16.mxu0 0
  %709 = vmatpush2.bf16.msra.mxu0 0
  %710 = vmatprep.subr.bf16.mxu0 0
  %711 = vmatpush2.bf16.msra.mxu0 0
  %712 = vmatprep.subr.bf16.mxu0 0
  %713 = vmatpush2.bf16.msra.mxu0 0
  %714 = vmatprep.subr.bf16.mxu0 0
  %715 = vmatpush2.bf16.msra.mxu0 0
  %716 = vmatprep.mubr.bf16.mxu0 0
  %717 = vmatmul.mubr.bf16.gmra.mxu0 %v679
  %v718 = vpop.f32.mrf.mxu0
  %v719 = vadd.f32 0.0, %v718
  %v720 = vpop.f32.mrf.mxu0
  %v721 = vpop.f32.mrf.mxu0
  %v722 = vpop.f32.mrf.mxu0
  %723 = vdwg.mxu0
  %v725 = vsel %vm42, %v535, 0
  %v728 = vsel %vm542, %v38, 0
  %730 = vmatprep.subr.bf16.mxu0 0
  %731 = vmatpush1.bf16.msra.mxu0 0
  %732 = vmatprep.subr.bf16.mxu0 0
  %733 = vmatpush1.bf16.msra.mxu0 0
  %734 = vmatprep.subr.bf16.mxu0 0
  %735 = vmatpush1.bf16.msra.mxu0 0
  %736 = vmatprep.subr.bf16.mxu0 0
  %737 = vmatpush1.bf16.msra.mxu0 0
  %738 = vmatprep.subr.bf16.mxu0 0
  %739 = vmatpush1.bf16.msra.mxu0 0
  %740 = vmatprep.subr.bf16.mxu0 0
  %741 = vmatpush1.bf16.msra.mxu0 0
  %742 = vmatprep.subr.bf16.mxu0 0
  %743 = vmatpush1.bf16.msra.mxu0 0
  %744 = vmatprep.subr.bf16.mxu0 0
  %745 = vmatpush1.bf16.msra.mxu0 %v728
  %746 = vmatprep.subr.bf16.mxu0 0
  %747 = vmatpush2.bf16.msra.mxu0 0
  %748 = vmatprep.subr.bf16.mxu0 0
  %749 = vmatpush2.bf16.msra.mxu0 0
  %750 = vmatprep.subr.bf16.mxu0 0
  %751 = vmatpush2.bf16.msra.mxu0 0
  %752 = vmatprep.subr.bf16.mxu0 0
  %753 = vmatpush2.bf16.msra.mxu0 0
  %754 = vmatprep.subr.bf16.mxu0 0
  %755 = vmatpush2.bf16.msra.mxu0 0
  %756 = vmatprep.subr.bf16.mxu0 0
  %757 = vmatpush2.bf16.msra.mxu0 0
  %758 = vmatprep.subr.bf16.mxu0 0
  %759 = vmatpush2.bf16.msra.mxu0 0
  %760 = vmatprep.subr.bf16.mxu0 0
  %761 = vmatpush2.bf16.msra.mxu0 0
  %762 = vmatprep.mubr.bf16.mxu0 0
  %763 = vmatmul.mubr.bf16.gmra.mxu0 %v725
  %v764 = vpop.f32.mrf.mxu0
  %v765 = vadd.f32 0.0, %v764
  %v766 = vpop.f32.mrf.mxu0
  %v767 = vpop.f32.mrf.mxu0
  %v768 = vpop.f32.mrf.mxu0
  %769 = vdwg.mxu0
  %v771 = vsel %vm42, %v536, 0
  %v774 = vsel %vm542, %v39, 0
  %776 = vmatprep.subr.bf16.mxu0 0
  %777 = vmatpush1.bf16.msra.mxu0 0
  %778 = vmatprep.subr.bf16.mxu0 0
  %779 = vmatpush1.bf16.msra.mxu0 0
  %780 = vmatprep.subr.bf16.mxu0 0
  %781 = vmatpush1.bf16.msra.mxu0 0
  %782 = vmatprep.subr.bf16.mxu0 0
  %783 = vmatpush1.bf16.msra.mxu0 0
  %784 = vmatprep.subr.bf16.mxu0 0
  %785 = vmatpush1.bf16.msra.mxu0 0
  %786 = vmatprep.subr.bf16.mxu0 0
  %787 = vmatpush1.bf16.msra.mxu0 0
  %788 = vmatprep.subr.bf16.mxu0 0
  %789 = vmatpush1.bf16.msra.mxu0 0
  %790 = vmatprep.subr.bf16.mxu0 0
  %791 = vmatpush1.bf16.msra.mxu0 %v774
  %792 = vmatprep.subr.bf16.mxu0 0
  %793 = vmatpush2.bf16.msra.mxu0 0
  %794 = vmatprep.subr.bf16.mxu0 0
  %795 = vmatpush2.bf16.msra.mxu0 0
  %796 = vmatprep.subr.bf16.mxu0 0
  %797 = vmatpush2.bf16.msra.mxu0 0
  %798 = vmatprep.subr.bf16.mxu0 0
  %799 = vmatpush2.bf16.msra.mxu0 0
  %800 = vmatprep.subr.bf16.mxu0 0
  %801 = vmatpush2.bf16.msra.mxu0 0
  %802 = vmatprep.subr.bf16.mxu0 0
  %803 = vmatpush2.bf16.msra.mxu0 0
  %804 = vmatprep.subr.bf16.mxu0 0
  %805 = vmatpush2.bf16.msra.mxu0 0
  %806 = vmatprep.subr.bf16.mxu0 0
  %807 = vmatpush2.bf16.msra.mxu0 0
  %808 = vmatprep.mubr.bf16.mxu0 0
  %809 = vmatmul.mubr.bf16.gmra.mxu0 %v771
  %v810 = vpop.f32.mrf.mxu0
  %v811 = vadd.f32 0.0, %v810
  %v812 = vpop.f32.mrf.mxu0
  %v813 = vpop.f32.mrf.mxu0
  %v814 = vpop.f32.mrf.mxu0
  %815 = vdwg.mxu0
  %v817 = vsel %vm42, %v537, 0
  %v820 = vsel %vm542, %v40, 0
  %822 = vmatprep.subr.bf16.mxu0 0
  %823 = vmatpush1.bf16.msra.mxu0 0
  %824 = vmatprep.subr.bf16.mxu0 0
  %825 = vmatpush1.bf16.msra.mxu0 0
  %826 = vmatprep.subr.bf16.mxu0 0
  %827 = vmatpush1.bf16.msra.mxu0 0
  %828 = vmatprep.subr.bf16.mxu0 0
  %829 = vmatpush1.bf16.msra.mxu0 0
  %830 = vmatprep.subr.bf16.mxu0 0
  %831 = vmatpush1.bf16.msra.mxu0 0
  %832 = vmatprep.subr.bf16.mxu0 0
  %833 = vmatpush1.bf16.msra.mxu0 0
  %834 = vmatprep.subr.bf16.mxu0 0
  %835 = vmatpush1.bf16.msra.mxu0 0
  %836 = vmatprep.subr.bf16.mxu0 0
  %837 = vmatpush1.bf16.msra.mxu0 %v820
  %838 = vmatprep.subr.bf16.mxu0 0
  %839 = vmatpush2.bf16.msra.mxu0 0
  %840 = vmatprep.subr.bf16.mxu0 0
  %841 = vmatpush2.bf16.msra.mxu0 0
  %842 = vmatprep.subr.bf16.mxu0 0
  %843 = vmatpush2.bf16.msra.mxu0 0
  %844 = vmatprep.subr.bf16.mxu0 0
  %845 = vmatpush2.bf16.msra.mxu0 0
  %846 = vmatprep.subr.bf16.mxu0 0
  %847 = vmatpush2.bf16.msra.mxu0 0
  %848 = vmatprep.subr.bf16.mxu0 0
  %849 = vmatpush2.bf16.msra.mxu0 0
  %850 = vmatprep.subr.bf16.mxu0 0
  %851 = vmatpush2.bf16.msra.mxu0 0
  %852 = vmatprep.subr.bf16.mxu0 0
  %853 = vmatpush2.bf16.msra.mxu0 0
  %854 = vmatprep.mubr.bf16.mxu0 0
  %855 = vmatmul.mubr.bf16.gmra.mxu0 %v817
  %v856 = vpop.f32.mrf.mxu0
  %v857 = vadd.f32 0.0, %v856
  %v858 = vpop.f32.mrf.mxu0
  %v859 = vpop.f32.mrf.mxu0
  %v860 = vpop.f32.mrf.mxu0
  %861 = vdwg.mxu0
  %v863 = vsel %vm42, %v538, 0
  %v866 = vsel %vm542, %v41, 0
  %868 = vmatprep.subr.bf16.mxu0 0
  %869 = vmatpush1.bf16.msra.mxu0 0
  %870 = vmatprep.subr.bf16.mxu0 0
  %871 = vmatpush1.bf16.msra.mxu0 0
  %872 = vmatprep.subr.bf16.mxu0 0
  %873 = vmatpush1.bf16.msra.mxu0 0
  %874 = vmatprep.subr.bf16.mxu0 0
  %875 = vmatpush1.bf16.msra.mxu0 0
  %876 = vmatprep.subr.bf16.mxu0 0
  %877 = vmatpush1.bf16.msra.mxu0 0
  %878 = vmatprep.subr.bf16.mxu0 0
  %879 = vmatpush1.bf16.msra.mxu0 0
  %880 = vmatprep.subr.bf16.mxu0 0
  %881 = vmatpush1.bf16.msra.mxu0 0
  %882 = vmatprep.subr.bf16.mxu0 0
  %883 = vmatpush1.bf16.msra.mxu0 %v866
  %884 = vmatprep.subr.bf16.mxu0 0
  %885 = vmatpush2.bf16.msra.mxu0 0
  %886 = vmatprep.subr.bf16.mxu0 0
  %887 = vmatpush2.bf16.msra.mxu0 0
  %888 = vmatprep.subr.bf16.mxu0 0
  %889 = vmatpush2.bf16.msra.mxu0 0
  %890 = vmatprep.subr.bf16.mxu0 0
  %891 = vmatpush2.bf16.msra.mxu0 0
  %892 = vmatprep.subr.bf16.mxu0 0
  %893 = vmatpush2.bf16.msra.mxu0 0
  %894 = vmatprep.subr.bf16.mxu0 0
  %895 = vmatpush2.bf16.msra.mxu0 0
  %896 = vmatprep.subr.bf16.mxu0 0
  %897 = vmatpush2.bf16.msra.mxu0 0
  %898 = vmatprep.subr.bf16.mxu0 0
  %899 = vmatpush2.bf16.msra.mxu0 0
  %900 = vmatprep.mubr.bf16.mxu0 0
  %901 = vmatmul.mubr.bf16.gmra.mxu0 %v863
  %v902 = vpop.f32.mrf.mxu0
  %v903 = vadd.f32 0.0, %v902
  %v904 = vpop.f32.mrf.mxu0
  %v905 = vpop.f32.mrf.mxu0
  %v906 = vpop.f32.mrf.mxu0
  %907 = vdwg.mxu0
  %v908 = vpack.c.bf16 %v581, %v581
  %v909 = vpack.c.bf16 %v627, %v627
  %v910 = vpack.c.bf16 %v673, %v673
  %v911 = vpack.c.bf16 %v719, %v719
  %v912 = vpack.c.bf16 %v765, %v765
  %v913 = vpack.c.bf16 %v811, %v811
  %v914 = vpack.c.bf16 %v857, %v857
  %v915 = vpack.c.bf16 %v903, %v903
  %vm916 = vcmask 60416
  %917 = vst.msk [vmem:[%s4] sm:$0xf] %vm916, %v908
  %918 = vst.msk [vmem:[%s4 + $0x4] sm:$0xf] %vm916, %v909
  %919 = vst.msk [vmem:[%s4 + $0x8] sm:$0xf] %vm916, %v910
  %920 = vst.msk [vmem:[%s4 + $0xc] sm:$0xf] %vm916, %v911
  %921 = vst.msk [vmem:[%s4 + $0x10] sm:$0xf] %vm916, %v912
  %922 = vst.msk [vmem:[%s4 + $0x14] sm:$0xf] %vm916, %v913
  %923 = vst.msk [vmem:[%s4 + $0x18] sm:$0xf] %vm916, %v914
  %924 = vst.msk [vmem:[%s4 + $0x1c] sm:$0xf] %vm916, %v915
  // Predicated region
  $region18: #{encoder_forward.7} parent=0 // pred_check
    _
  $region19: #{encoder_forward.7} parent=0 // pred_check_branch
    %926 = sbr.rel (0) target = $region21
  $region20: #{encoder_forward.7} parent=0 // pred_region
    _
  $region21: #{encoder_forward.7} parent=0 // pred_fallthru
    _
  // Predicated region
  $region22: #{encoder_forward.7} parent=0 // pred_check
    _
  $region23: #{encoder_forward.7} parent=0 // pred_check_branch
    %928 = sbr.rel (0) target = $region25
  $region24: #{encoder_forward.7} parent=0 // pred_region
    _
  $region25: #{encoder_forward.7} parent=0 // pred_fallthru
    _

// kernel: encoder_forward.11
$region0: #{encoder_forward.11}
  #allocation0 [shape = 'u32[]', space=smem, size = 0x4, offset = 0x4, fixed_abs, tag = 'smem constant byte address 0x4 - core index']
  #allocation1 [shape = 'u32[144,128]{1,0:T(1,128)}', space=vmem, size = 0x12000, scoped, tag = 'internal scratch']
  %s0 = inlined_call_operand.vmem [shape: f32[16,32], index: 0, kind: input, shape index: {}]
  %s1 = inlined_call_operand.vmem [shape: bf16[16,32], index: 1, kind: input, shape index: {}]
  %s2 = inlined_call_operand.vmem [shape: bf16[32,32], index: 2, kind: input, shape index: {}]
  %s3 = inlined_call_operand.vmem [shape: f32[1,32], index: 3, kind: input, shape index: {}]
  %s4 = inlined_call_operand.vmem [shape: f32[1,32], index: 4, kind: input, shape index: {}]
  %s5 = inlined_call_operand.vmem [shape: f32[1,32], index: 5, kind: input, shape index: {}]
  %s6 = inlined_call_operand.vmem [shape: bf16[32,64], index: 6, kind: input, shape index: {}]
  %s7 = inlined_call_operand.vmem [shape: f32[1,64], index: 7, kind: input, shape index: {}]
  %s8 = inlined_call_operand.vmem [shape: bf16[64,32], index: 8, kind: input, shape index: {}]
  %s9 = inlined_call_operand.vmem [shape: f32[1,32], index: 9, kind: input, shape index: {}]
  %s10 = inlined_call_operand.vmem [shape: f32[1,32], index: 10, kind: input, shape index: {}]
  %s11 = inlined_call_operand.vmem [shape: f32[1,32], index: 11, kind: input, shape index: {}]
  %s12 = inlined_call_operand.hbm [shape: f32[16,32], index: 12, kind: output, shape index: {}]
  %s13 = sld [smem:[#allocation0]]
  $region58: #{encoder_forward.11} parent=0
    _
  %s15 = ssub.s32 1, %s13
  %s16 = scalar_select 0, %s15, %s13
  $region1: #{encoder_forward.11} parent=0
    #allocation2 [shape = 'u8[8192]{0}', space=vmem, size = 0x2000, scoped, tag = 'output window, operand 0, single buffered']
    #allocation3 [shape = 's32[1]{0}', space=sflag, size = 0x4, scoped, tag = 'scoped memory for encoder_forward.11']
    %17 = vsyncpa [#allocation3], 0
    // Predicated region
    $region2: #{encoder_forward.11} parent=1 // pred_check
      _
    $region3: #{encoder_forward.11} parent=1 // pred_check_branch
      %19 = sbr.rel (0) target = $region5
    $region4: #{encoder_forward.11} parent=1 // pred_region
      _
    $region5: #{encoder_forward.11} parent=1 // pred_fallthru
      _
    // Predicated region
    $region6: #{encoder_forward.11} parent=1 // pred_check
      _
    $region7: #{encoder_forward.11} parent=1 // pred_check_branch
      %21 = sbr.rel (0) target = $region9
    $region8: #{encoder_forward.11} parent=1 // pred_region
      _
    $region9: #{encoder_forward.11} parent=1 // pred_fallthru
      _
    // Predicated region
    $region10: #{encoder_forward.11} parent=1 // pred_check
      _
    $region11: #{encoder_forward.11} parent=1 // pred_check_branch
      %23 = sbr.rel (0) target = $region13
    $region12: #{encoder_forward.11} parent=1 // pred_region
      _
    $region13: #{encoder_forward.11} parent=1 // pred_fallthru
      _
    // Predicated region
    $region14: #{encoder_forward.11} parent=1 // pred_check
      _
    $region15: #{encoder_forward.11} parent=1 // pred_check_branch
      %25 = sbr.rel (0) target = $region17
    $region16: #{encoder_forward.11} parent=1 // pred_region
      _
    $region17: #{encoder_forward.11} parent=1 // pred_fallthru
      _
    // Predicated region
    $region18: #{encoder_forward.11} parent=1 // pred_check
      _
    $region19: #{encoder_forward.11} parent=1 // pred_check_branch
      %27 = sbr.rel (0) target = $region21
    $region20: #{encoder_forward.11} parent=1 // pred_region
      _
    $region21: #{encoder_forward.11} parent=1 // pred_fallthru
      _
    // Predicated region
    $region22: #{encoder_forward.11} parent=1 // pred_check
      _
    $region23: #{encoder_forward.11} parent=1 // pred_check_branch
      %29 = sbr.rel (0) target = $region25
    $region24: #{encoder_forward.11} parent=1 // pred_region
      _
    $region25: #{encoder_forward.11} parent=1 // pred_fallthru
      _
    // Predicated region
    $region26: #{encoder_forward.11} parent=1 // pred_check
      _
    $region27: #{encoder_forward.11} parent=1 // pred_check_branch
      %31 = sbr.rel (0) target = $region29
    $region28: #{encoder_forward.11} parent=1 // pred_region
      _
    $region29: #{encoder_forward.11} parent=1 // pred_fallthru
      _
    // Predicated region
    $region30: #{encoder_forward.11} parent=1 // pred_check
      _
    $region31: #{encoder_forward.11} parent=1 // pred_check_branch
      %33 = sbr.rel (0) target = $region33
    $region32: #{encoder_forward.11} parent=1 // pred_region
      _
    $region33: #{encoder_forward.11} parent=1 // pred_fallthru
      _
    // Predicated region
    $region34: #{encoder_forward.11} parent=1 // pred_check
      _
    $region35: #{encoder_forward.11} parent=1 // pred_check_branch
      %35 = sbr.rel (0) target = $region37
    $region36: #{encoder_forward.11} parent=1 // pred_region
      _
    $region37: #{encoder_forward.11} parent=1 // pred_fallthru
      _
    // Predicated region
    $region38: #{encoder_forward.11} parent=1 // pred_check
      _
    $region39: #{encoder_forward.11} parent=1 // pred_check_branch
      %37 = sbr.rel (0) target = $region41
    $region40: #{encoder_forward.11} parent=1 // pred_region
      _
    $region41: #{encoder_forward.11} parent=1 // pred_fallthru
      _
    // Predicated region
    $region42: #{encoder_forward.11} parent=1 // pred_check
      _
    $region43: #{encoder_forward.11} parent=1 // pred_check_branch
      %39 = sbr.rel (0) target = $region45
    $region44: #{encoder_forward.11} parent=1 // pred_region
      _
    $region45: #{encoder_forward.11} parent=1 // pred_fallthru
      _
    // Predicated region
    $region46: #{encoder_forward.11} parent=1 // pred_check
      _
    $region47: #{encoder_forward.11} parent=1 // pred_check_branch
      %41 = sbr.rel (0) target = $region49
    $region48: #{encoder_forward.11} parent=1 // pred_region
      _
    $region49: #{encoder_forward.11} parent=1 // pred_fallthru
      _
    %v43 = vld [vmem:[%s0] sm:$0xff]
    %v44 = vld [vmem:[%s0 + $0x8] sm:$0xff]
    %v45 = vld [vmem:[%s1] sm:$0xf]
    %v46 = vld [vmem:[%s1 + $0x4] sm:$0xf]
    %v47 = vld [vmem:[%s2] sm:$0xf]
    %v48 = vld [vmem:[%s2 + $0x4] sm:$0xf]
    %v49 = vld [vmem:[%s2 + $0x8] sm:$0xf]
    %v50 = vld [vmem:[%s2 + $0xc] sm:$0xf]
    %v51 = vld [vmem:[%s3] sm:$0x1]
    %v53 = vlaneseq
    %v54 = vshrl.u32 %v53, 7
    %v55 = vsub.s32 0, %v54
    %v56 = vrot.slane %v51, %v55
    %v60 = vunpack.c.l.b16 %v45
    %v61 = vunpack.c.l.b16 %v46
    %v62 = vpack.c.b16 %v61, %v60
    %v67 = vunpack.c.l.b16 %v47
    %v68 = vunpack.c.l.b16 %v48
    %v69 = vunpack.c.l.b16 %v49
    %v70 = vunpack.c.l.b16 %v50
    %v71 = vpack.c.b16 %v68, %v67
    %v72 = vpack.c.b16 %v70, %v69
    %vm75 = vcmask 261120
    %v77 = vsel %vm75, %v62, 0
    %79 = vmatprep.subr.bf16.mxu0 0
    %80 = vmatpush1.bf16.msra.mxu0 0
    %81 = vmatprep.subr.bf16.mxu0 0
    %82 = vmatpush1.bf16.msra.mxu0 0
    %83 = vmatprep.subr.bf16.mxu0 0
    %84 = vmatpush1.bf16.msra.mxu0 0
    %85 = vmatprep.subr.bf16.mxu0 0
    %86 = vmatpush1.bf16.msra.mxu0 0
    %87 = vmatprep.subr.bf16.mxu0 0
    %88 = vmatpush1.bf16.msra.mxu0 0
    %89 = vmatprep.subr.bf16.mxu0 0
    %90 = vmatpush1.bf16.msra.mxu0 0
    %91 = vmatprep.subr.bf16.mxu0 0
    %92 = vmatpush1.bf16.msra.mxu0 %v72
    %93 = vmatprep.subr.bf16.mxu0 0
    %94 = vmatpush1.bf16.msra.mxu0 %v71
    %95 = vmatprep.subr.bf16.mxu0 0
    %96 = vmatpush2.bf16.msra.mxu0 0
    %97 = vmatprep.subr.bf16.mxu0 0
    %98 = vmatpush2.bf16.msra.mxu0 0
    %99 = vmatprep.subr.bf16.mxu0 0
    %100 = vmatpush2.bf16.msra.mxu0 0
    %101 = vmatprep.subr.bf16.mxu0 0
    %102 = vmatpush2.bf16.msra.mxu0 0
    %103 = vmatprep.subr.bf16.mxu0 0
    %104 = vmatpush2.bf16.msra.mxu0 0
    %105 = vmatprep.subr.bf16.mxu0 0
    %106 = vmatpush2.bf16.msra.mxu0 0
    %107 = vmatprep.subr.bf16.mxu0 0
    %108 = vmatpush2.bf16.msra.mxu0 0
    %109 = vmatprep.subr.bf16.mxu0 0
    %110 = vmatpush2.bf16.msra.mxu0 0
    %111 = vmatprep.mubr.bf16.mxu0 0
    %112 = vmatmul.mubr.bf16.gmra.mxu0 %v77
    %v113 = vpop.f32.mrf.mxu0
    %v114 = vadd.f32 %v56, %v113
    %v115 = vpop.f32.mrf.mxu0
    %v116 = vpop.f32.mrf.mxu0
    %v117 = vadd.f32 %v56, %v116
    %v118 = vpop.f32.mrf.mxu0
    %119 = vdwg.mxu0
    %v120 = vadd.f32 %v43, %v114
    %v121 = vadd.f32 %v44, %v117
    %v122 = vsel %vm75, %v120, 0.0
    %123 = vadd.xlane.f32.xlu0 %v122
    %v124 = vpop.xlane.xlu0 %123
    %v125 = vsel %vm75, %v121, 0.0
    %126 = vadd.xlane.f32.xlu0 %v125
    %v127 = vpop.xlane.xlu0 %126
    %v128 = vrcp.pop 32.0
    %v129 = vmul.f32 %v124, %v128
    %v130 = vmul.f32 %v127, %v128
    %v131 = vsub.f32 %v120, %v129
    %v132 = vsub.f32 %v121, %v130
    %v133 = vmul.f32 %v131, %v131
    %v134 = vmul.f32 %v132, %v132
    %v135 = vsel %vm75, %v133, 0.0
    %136 = vadd.xlane.f32.xlu0 %v135
    %v137 = vpop.xlane.xlu0 %136
    %v138 = vsel %vm75, %v134, 0.0
    %139 = vadd.xlane.f32.xlu0 %v138
    %v140 = vpop.xlane.xlu0 %139
    %v141 = vmul.f32 %v137, %v128
    %v142 = vmul.f32 %v140, %v128
    %v143 = vadd.f32 %v141, 1e-05
    %v144 = vadd.f32 %v142, 1e-05
    %v145 = vrsqrt.pop %v143
    %v146 = vrsqrt.pop %v144
    %v147 = vmul.f32 %v131, %v145
    %v148 = vmul.f32 %v132, %v146
    %v149 = vld [vmem:[%s4] sm:$0x1]
    %v151 = vlaneseq
    %v152 = vshrl.u32 %v151, 7
    %v153 = vsub.s32 0, %v152
    %v154 = vrot.slane %v149, %v153
    %v156 = vmul.f32 %v147, %v154
    %v157 = vmul.f32 %v148, %v154
    %v158 = vld [vmem:[%s5] sm:$0x1]
    %v160 = vlaneseq
    %v161 = vshrl.u32 %v160, 7
    %v162 = vsub.s32 0, %v161
    %v163 = vrot.slane %v158, %v162
    %v165 = vadd.f32 %v156, %v163
    %v166 = vadd.f32 %v157, %v163
    %v167 = vpack.c.bf16 %v166, %v165
    %v168 = vld [vmem:[%s6] sm:$0xf]
    %v169 = vld [vmem:[%s6 + $0x4] sm:$0xf]
    %v170 = vld [vmem:[%s6 + $0x8] sm:$0xf]
    %v171 = vld [vmem:[%s6 + $0xc] sm:$0xf]
    %v172 = vld [vmem:[%s7] sm:$0x1]
    %v174 = vlaneseq
    %v175 = vshrl.u32 %v174, 7
    %v176 = vsub.s32 0, %v175
    %v177 = vrot.slane %v172, %v176
    %v183 = vunpack.c.l.b16 %v168
    %v184 = vunpack.c.l.b16 %v169
    %v185 = vunpack.c.l.b16 %v170
    %v186 = vunpack.c.l.b16 %v171
    %v187 = vpack.c.b16 %v184, %v183
    %v188 = vpack.c.b16 %v186, %v185
    %v192 = vsel %vm75, %v167, 0
    %194 = vmatprep.subr.bf16.mxu0 0
    %195 = vmatpush1.bf16.msra.mxu0 0
    %196 = vmatprep.subr.bf16.mxu0 0
    %197 = vmatpush1.bf16.msra.mxu0 0
    %198 = vmatprep.subr.bf16.mxu0 0
    %199 = vmatpush1.bf16.msra.mxu0 0
    %200 = vmatprep.subr.bf16.mxu0 0
    %201 = vmatpush1.bf16.msra.mxu0 0
    %202 = vmatprep.subr.bf16.mxu0 0
    %203 = vmatpush1.bf16.msra.mxu0 0
    %204 = vmatprep.subr.bf16.mxu0 0
    %205 = vmatpush1.bf16.msra.mxu0 0
    %206 = vmatprep.subr.bf16.mxu0 0
    %207 = vmatpush1.bf16.msra.mxu0 %v188
    %208 = vmatprep.subr.bf16.mxu0 0
    %209 = vmatpush1.bf16.msra.mxu0 %v187
    %210 = vmatprep.subr.bf16.mxu0 0
    %211 = vmatpush2.bf16.msra.mxu0 0
    %212 = vmatprep.subr.bf16.mxu0 0
    %213 = vmatpush2.bf16.msra.mxu0 0
    %214 = vmatprep.subr.bf16.mxu0 0
    %215 = vmatpush2.bf16.msra.mxu0 0
    %216 = vmatprep.subr.bf16.mxu0 0
    %217 = vmatpush2.bf16.msra.mxu0 0
    %218 = vmatprep.subr.bf16.mxu0 0
    %219 = vmatpush2.bf16.msra.mxu0 0
    %220 = vmatprep.subr.bf16.mxu0 0
    %221 = vmatpush2.bf16.msra.mxu0 0
    %222 = vmatprep.subr.bf16.mxu0 0
    %223 = vmatpush2.bf16.msra.mxu0 0
    %224 = vmatprep.subr.bf16.mxu0 0
    %225 = vmatpush2.bf16.msra.mxu0 0
    %226 = vmatprep.mubr.bf16.mxu0 0
    %227 = vmatmul.mubr.bf16.gmra.mxu0 %v192
    %v228 = vpop.f32.mrf.mxu0
    %v229 = vadd.f32 %v177, %v228
    %v230 = vpop.f32.mrf.mxu0
    %v231 = vpop.f32.mrf.mxu0
    %v232 = vadd.f32 %v177, %v231
    %v233 = vpop.f32.mrf.mxu0
    %234 = vdwg.mxu0
    %v235 = vmax.f32 %v229, 0.0
    %v236 = vmax.f32 %v232, 0.0
    %v237 = vpack.c.bf16 %v236, %v235
    %v238 = vld [vmem:[%s8] sm:$0xf]
    %v239 = vld [vmem:[%s8 + $0x4] sm:$0xf]
    %v240 = vld [vmem:[%s8 + $0x8] sm:$0xf]
    %v241 = vld [vmem:[%s8 + $0xc] sm:$0xf]
    %v242 = vld [vmem:[%s8 + $0x10] sm:$0xf]
    %v243 = vld [vmem:[%s8 + $0x14] sm:$0xf]
    %v244 = vld [vmem:[%s8 + $0x18] sm:$0xf]
    %v245 = vld [vmem:[%s8 + $0x1c] sm:$0xf]
    %v246 = vld [vmem:[%s9] sm:$0x1]
    %v248 = vlaneseq
    %v249 = vshrl.u32 %v248, 7
    %v250 = vsub.s32 0, %v249
    %v251 = vrot.slane %v246, %v250
    %v261 = vunpack.c.l.b16 %v238
    %v262 = vunpack.c.l.b16 %v239
    %v263 = vunpack.c.l.b16 %v240
    %v264 = vunpack.c.l.b16 %v241
    %v265 = vunpack.c.l.b16 %v242
    %v266 = vunpack.c.l.b16 %v243
    %v267 = vunpack.c.l.b16 %v244
    %v268 = vunpack.c.l.b16 %v245
    %v269 = vpack.c.b16 %v262, %v261
    %v270 = vpack.c.b16 %v264, %v263
    %v271 = vpack.c.b16 %v266, %v265
    %v272 = vpack.c.b16 %v268, %v267
    %vm277 = vcmask 523264
    %v279 = vsel %vm277, %v237, 0
    %281 = vmatprep.subr.bf16.mxu0 0
    %282 = vmatpush1.bf16.msra.mxu0 0
    %283 = vmatprep.subr.bf16.mxu0 0
    %284 = vmatpush1.bf16.msra.mxu0 0
    %285 = vmatprep.subr.bf16.mxu0 0
    %286 = vmatpush1.bf16.msra.mxu0 0
    %287 = vmatprep.subr.bf16.mxu0 0
    %288 = vmatpush1.bf16.msra.mxu0 0
    %289 = vmatprep.subr.bf16.mxu0 0
    %290 = vmatpush1.bf16.msra.mxu0 %v272
    %291 = vmatprep.subr.bf16.mxu0 0
    %292 = vmatpush1.bf16.msra.mxu0 %v271
    %293 = vmatprep.subr.bf16.mxu0 0
    %294 = vmatpush1.bf16.msra.mxu0 %v270
    %295 = vmatprep.subr.bf16.mxu0 0
    %296 = vmatpush1.bf16.msra.mxu0 %v269
    %297 = vmatprep.subr.bf16.mxu0 0
    %298 = vmatpush2.bf16.msra.mxu0 0
    %299 = vmatprep.subr.bf16.mxu0 0
    %300 = vmatpush2.bf16.msra.mxu0 0
    %301 = vmatprep.subr.bf16.mxu0 0
    %302 = vmatpush2.bf16.msra.mxu0 0
    %303 = vmatprep.subr.bf16.mxu0 0
    %304 = vmatpush2.bf16.msra.mxu0 0
    %305 = vmatprep.subr.bf16.mxu0 0
    %306 = vmatpush2.bf16.msra.mxu0 0
    %307 = vmatprep.subr.bf16.mxu0 0
    %308 = vmatpush2.bf16.msra.mxu0 0
    %309 = vmatprep.subr.bf16.mxu0 0
    %310 = vmatpush2.bf16.msra.mxu0 0
    %311 = vmatprep.subr.bf16.mxu0 0
    %312 = vmatpush2.bf16.msra.mxu0 0
    %313 = vmatprep.mubr.bf16.mxu0 0
    %314 = vmatmul.mubr.bf16.gmra.mxu0 %v279
    %v315 = vpop.f32.mrf.mxu0
    %v316 = vadd.f32 %v251, %v315
    %v317 = vpop.f32.mrf.mxu0
    %v318 = vpop.f32.mrf.mxu0
    %v319 = vadd.f32 %v251, %v318
    %v320 = vpop.f32.mrf.mxu0
    %321 = vdwg.mxu0
    %v322 = vadd.f32 %v165, %v316
    %v323 = vadd.f32 %v166, %v319
    %v324 = vsel %vm75, %v322, 0.0
    %325 = vadd.xlane.f32.xlu0 %v324
    %v326 = vpop.xlane.xlu0 %325
    %v327 = vsel %vm75, %v323, 0.0
    %328 = vadd.xlane.f32.xlu0 %v327
    %v329 = vpop.xlane.xlu0 %328
    %v330 = vmul.f32 %v326, %v128
    %v331 = vmul.f32 %v329, %v128
    %v332 = vsub.f32 %v322, %v330
    %v333 = vsub.f32 %v323, %v331
    %v334 = vmul.f32 %v332, %v332
    %v335 = vmul.f32 %v333, %v333
    %v336 = vsel %vm75, %v334, 0.0
    %337 = vadd.xlane.f32.xlu0 %v336
    %v338 = vpop.xlane.xlu0 %337
    %v339 = vsel %vm75, %v335, 0.0
    %340 = vadd.xlane.f32.xlu0 %v339
    %v341 = vpop.xlane.xlu0 %340
    %v342 = vmul.f32 %v338, %v128
    %v343 = vmul.f32 %v341, %v128
    %v344 = vadd.f32 %v342, 1e-05
    %v345 = vadd.f32 %v343, 1e-05
    %v346 = vrsqrt.pop %v344
    %v347 = vrsqrt.pop %v345
    %v348 = vmul.f32 %v332, %v346
    %v349 = vmul.f32 %v333, %v347
    %v350 = vld [vmem:[%s10] sm:$0x1]
    %v352 = vlaneseq
    %v353 = vshrl.u32 %v352, 7
    %v354 = vsub.s32 0, %v353
    %v355 = vrot.slane %v350, %v354
    %v357 = vmul.f32 %v348, %v355
    %v358 = vmul.f32 %v349, %v355
    %v359 = vld [vmem:[%s11] sm:$0x1]
    %v361 = vlaneseq
    %v362 = vshrl.u32 %v361, 7
    %v363 = vsub.s32 0, %v362
    %v364 = vrot.slane %v359, %v363
    %v366 = vadd.f32 %v357, %v364
    %v367 = vadd.f32 %v358, %v364
    %368 = vst.msk [vmem:[#allocation2] sm:$0xff] %vm75, %v366
    %369 = vst.msk [vmem:[#allocation2 + $0x8] sm:$0xff] %vm75, %v367
    // Predicated region
    $region50: #{encoder_forward.11} parent=1 // pred_check
      _
    $region51: #{encoder_forward.11} parent=1 // pred_check_branch
      %371 = sbr.rel (0) target = $region53
    $region52: #{encoder_forward.11} parent=1 // pred_region
      %s373 = ssub.s32 256, 256
      %374 = vsyncadd [#allocation3], %s373
      %s375 = sshll.u32 [#allocation2], 4
      %s376 = int_to_ptr.vmem [resolvable:$true] %s375
      %381 = dma.vmem_to_hbm [thread:$0]  %s376, 256, %s12, [#allocation3], 128, 128, 8
    $region53: #{encoder_forward.11} parent=1 // pred_fallthru
      _
    // Predicated region
    $region54: #{encoder_forward.11} parent=1 // pred_check
      _
    $region55: #{encoder_forward.11} parent=1 // pred_check_branch
      %383 = sbr.rel (0) target = $region57
    $region56: #{encoder_forward.11} parent=1 // pred_region
      %384 = dma.done [#allocation3], 256
    $region57: #{encoder_forward.11} parent=1 // pred_fallthru
      _
    %385 = vsyncpa [#allocation3], 1

</llo_original>
